<compile_context>
chip_gen: v6e
topology: v6e:2x2x1
jax: 0.10.0
libtpu: 0.0.40
codegen_flags: <defaults>
</compile_context>

<pallas_src>
import functools
import math

import jax
import jax.numpy as jnp
from jax.experimental import pallas as pl
from jax.experimental.pallas import tpu as pltpu

D_MODEL = 32
N_HEADS = 4
D_HEAD = D_MODEL // N_HEADS
D_FF = 4 * D_MODEL
LN_EPS = 1e-5  # torch.nn.LayerNorm default
QKV_COLS = 3 * D_MODEL                                  # 96 useful fused-projection cols
QKV_PAD = ((QKV_COLS + 127) // 128) * 128               # 128: lane-dense projection output


def _layernorm(h, gamma, beta):
    # gamma/beta are (1, D); h is (N, D). Biased variance, like torch.
    mean = jnp.mean(h, axis=-1, keepdims=True)
    var = jnp.mean(jnp.square(h - mean), axis=-1, keepdims=True)
    return (h - mean) * jax.lax.rsqrt(var + LN_EPS) * gamma + beta


def transformer_block_kernel(
    x_ref,                        # (rows, D) f32, rows = Bt * T
    wqkv_ref,                     # (D, QKV_PAD) bf16: [Wq*scale | Wk | Wv | 0-pad]
    wo_ref, bo_ref,               # (D, D) bf16, (1, D) f32
    ln1g_ref, ln1b_ref,           # (1, D) f32
    w1_ref, b1_ref,               # (D, 4D) bf16, (1, 4D) f32
    w2_ref, b2_ref,               # (4D, D) bf16, (1, D) f32
    ln2g_ref, ln2b_ref,           # (1, D) f32
    o_ref,                        # (rows, D)
    *, seq_len,
):
    rows = x_ref.shape[0]
    bt = rows // seq_len

    x2 = x_ref[...]                           # (rows, D) f32 — no redundant cast
    xb = x2.astype(jnp.bfloat16)

    # --- fused QKV projection: single bf16 MXU pass, f32 accumulation, 128 lanes ---
    qkv = jnp.dot(xb, wqkv_ref[...], preferred_element_type=jnp.float32)   # (rows, 128)
    qkv3 = qkv.reshape(bt, seq_len, QKV_PAD)   # leading-dim split only (free relayout)

    # --- attention core: static head loop; outputs kept in vregs, one lane-concat ---
    head_outs = []
    for h in range(N_HEADS):
        lo = h * D_HEAD
        q_h = qkv3[:, :, lo:lo + D_HEAD]                                   # (bt, T, dh)
        k_h = qkv3[:, :, D_MODEL + lo:D_MODEL + lo + D_HEAD]
        v_h = qkv3[:, :, 2 * D_MODEL + lo:2 * D_MODEL + lo + D_HEAD]
        s = jnp.einsum("bqd,bkd->bqk", q_h, k_h,
                       preferred_element_type=jnp.float32)                 # (bt, T, T)
        s = s - jnp.max(s, axis=-1, keepdims=True)
        p = jnp.exp(s)
        p = p * pl.reciprocal(jnp.sum(p, axis=-1, keepdims=True), approx=True)
        head_outs.append(jnp.einsum("bqk,bkd->bqd", p, v_h,
                                    preferred_element_type=jnp.float32))   # (bt, T, dh)
    attn = jnp.concatenate(head_outs, axis=-1).reshape(rows, D_MODEL)

    attn = jnp.dot(attn.astype(jnp.bfloat16), wo_ref[...],
                   preferred_element_type=jnp.float32) + bo_ref[...]

    # --- residual + norm1 ---
    h1 = _layernorm(x2 + attn, ln1g_ref[...], ln1b_ref[...])               # (rows, D)

    # --- FFN (w1: N=128 lane-dense on the MXU) ---
    ff = jnp.dot(h1.astype(jnp.bfloat16), w1_ref[...],
                 preferred_element_type=jnp.float32) + b1_ref[...]         # (rows, 4D)
    ff = jnp.maximum(ff, 0.0)
    ff = jnp.dot(ff.astype(jnp.bfloat16), w2_ref[...],
                 preferred_element_type=jnp.float32) + b2_ref[...]         # (rows, D)

    # --- residual + norm2 ---
    out = _layernorm(h1 + ff, ln2g_ref[...], ln2b_ref[...])
    o_ref[...] = out.astype(o_ref.dtype)


def _prep_params(params):
    """Fold softmax scale into Wq, fuse+pad QKV, cast weight matrices to bf16."""
    scale = 1.0 / math.sqrt(D_HEAD)
    wqkv = jnp.concatenate(
        [params["wq"] * scale, params["wk"], params["wv"]], axis=1)        # (D, 3D)
    wqkv = jnp.pad(wqkv, ((0, 0), (0, QKV_PAD - QKV_COLS)))                # -> (D, 128)
    bf = lambda w: w.astype(jnp.bfloat16)
    return dict(
        wqkv=bf(wqkv),
        wo=bf(params["wo"]), bo=params["bo"],
        ln1_g=params["ln1_g"], ln1_b=params["ln1_b"],
        w1=bf(params["w1"]), b1=params["b1"],
        w2=bf(params["w2"]), b2=params["b2"],
        ln2_g=params["ln2_g"], ln2_b=params["ln2_b"],
    )


def transformer_block(x, params, block_b=None):
    """x: (B, T, D) float32."""
    B, T, D = x.shape
    assert D == D_MODEL

    if block_b is None:
        # Default: ONE grid step (block_b = B). Only split for the v7x second core when
        # each half still has thousands of rows of M work; VMEM is never the constraint
        # here (whole working set << 1 MiB).
        if B % 2 == 0 and (B // 2) * T >= 2048:
            block_b = B // 2
        else:
            block_b = B
    num_blocks = pl.cdiv(B, block_b)
    rows_per_block = block_b * T

    x2 = x.reshape(B * T, D)   # flat row slab in/out; no 3-D relayout inside the kernel

    def full(shape):
        nd = len(shape)
        # Same block index every grid step -> stays resident in VMEM (no re-DMA).
        return pl.BlockSpec(shape, lambda b, _nd=nd: (0,) * _nd)

    p = _prep_params(params)
    kernel = functools.partial(transformer_block_kernel, seq_len=T)

    out2 = pl.pallas_call(
        kernel,
        out_shape=jax.ShapeDtypeStruct((B * T, D), x.dtype),
        grid_spec=pltpu.PrefetchScalarGridSpec(
            num_scalar_prefetch=0,
            grid=(num_blocks,),
            in_specs=[
                pl.BlockSpec((rows_per_block, D), lambda b: (b, 0)),   # x slab
                full((D, QKV_PAD)),                                    # fused qkv weight
                full((D, D)), full((1, D)),                            # wo, bo
                full((1, D)), full((1, D)),                            # ln1 gamma/beta
                full((D, D_FF)), full((1, D_FF)),                      # w1, b1
                full((D_FF, D)), full((1, D)),                         # w2, b2
                full((1, D)), full((1, D)),                            # ln2 gamma/beta
            ],
            out_specs=pl.BlockSpec((rows_per_block, D), lambda b: (b, 0)),
        ),
        compiler_params=pltpu.CompilerParams(
            dimension_semantics=("parallel",),
        ),
    )(
        x2,
        p["wqkv"],
        p["wo"], p["bo"],
        p["ln1_g"], p["ln1_b"],
        p["w1"], p["b1"],
        p["w2"], p["b2"],
        p["ln2_g"], p["ln2_b"],
    )
    return out2.reshape(B, T, D)


def init_params(key):
    ks = jax.random.split(key, 8)
    scale = 0.02
    return {
        "wq": scale * jax.random.normal(ks[0], (D_MODEL, D_MODEL), jnp.float32),
        "wk": scale * jax.random.normal(ks[1], (D_MODEL, D_MODEL), jnp.float32),
        "wv": scale * jax.random.normal(ks[2], (D_MODEL, D_MODEL), jnp.float32),
        "wo": scale * jax.random.normal(ks[3], (D_MODEL, D_MODEL), jnp.float32),
        "bo": scale * jax.random.normal(ks[4], (1, D_MODEL), jnp.float32),
        "ln1_g": jnp.ones((1, D_MODEL), jnp.float32),
        "ln1_b": jnp.zeros((1, D_MODEL), jnp.float32),
        "w1": scale * jax.random.normal(ks[5], (D_MODEL, D_FF), jnp.float32),
        "b1": scale * jax.random.normal(ks[6], (1, D_FF), jnp.float32),
        "w2": scale * jax.random.normal(ks[7], (D_FF, D_MODEL), jnp.float32),
        "b2": jnp.zeros((1, D_MODEL), jnp.float32),
        "ln2_g": jnp.ones((1, D_MODEL), jnp.float32),
        "ln2_b": jnp.zeros((1, D_MODEL), jnp.float32),
    }


def reference_block(x, p):
    """Pure-JAX f32 reference mirroring the PyTorch forward (inference mode)."""
    B, T, D = x.shape
    q = x @ p["wq"]
    k = x @ p["wk"]
    v = x @ p["wv"]
    q = q.reshape(B, T, N_HEADS, D_HEAD).transpose(0, 2, 1, 3)
    k = k.reshape(B, T, N_HEADS, D_HEAD).transpose(0, 2, 1, 3)
    v = v.reshape(B, T, N_HEADS, D_HEAD).transpose(0, 2, 1, 3)
    scores = jnp.einsum("bhqd,bhkd->bhqk", q, k) / math.sqrt(D_HEAD)
    probs = jax.nn.softmax(scores, axis=-1)
    attn = jnp.einsum("bhqk,bhkd->bhqd", probs, v).transpose(0, 2, 1, 3).reshape(B, T, D)
    attn = attn @ p["wo"] + p["bo"][0]

    def ln(h, g, b):
        m = jnp.mean(h, axis=-1, keepdims=True)
        var = jnp.mean((h - m) ** 2, axis=-1, keepdims=True)
        return (h - m) / jnp.sqrt(var + LN_EPS) * g[0] + b[0]

    h1 = ln(x + attn, p["ln1_g"], p["ln1_b"])
    ff = jnp.maximum(h1 @ p["w1"] + p["b1"][0], 0.0) @ p["w2"] + p["b2"][0]
    return ln(h1 + ff, p["ln2_g"], p["ln2_b"])


if __name__ == "__main__":
    key = jax.random.PRNGKey(0)
    k_x, k_p = jax.random.split(key)

    B, T = 2, 8
    x = jax.random.normal(k_x, (B, T, D_MODEL), jnp.float32)
    params = init_params(k_p)

    out = transformer_block(x, params)
    out = jax.block_until_ready(out)

    ref = reference_block(x, params)
    assert out.shape == (B, T, D_MODEL)
    max_err = float(jnp.max(jnp.abs(out - ref)))
    # bf16 weights + approx reciprocal vs. f32 reference: expected error ~1e-3.
    assert jnp.allclose(out, ref, atol=2e-2, rtol=2e-2), (
        f"mismatch vs reference (max abs err {max_err})")

    print("KERNEL_OK")
</pallas_src>

<mosaic_0001>
module attributes {stable_mosaic.version = 11 : i64} {
  func.func @transformer_block_kernel(%arg0: i32, %arg1: memref<16x32xf32, #tpu.memory_space<vmem>>, %arg2: memref<32x128xbf16, #tpu.memory_space<vmem>>, %arg3: memref<32x32xbf16, #tpu.memory_space<vmem>>, %arg4: memref<1x32xf32, #tpu.memory_space<vmem>>, %arg5: memref<1x32xf32, #tpu.memory_space<vmem>>, %arg6: memref<1x32xf32, #tpu.memory_space<vmem>>, %arg7: memref<32x128xbf16, #tpu.memory_space<vmem>>, %arg8: memref<1x128xf32, #tpu.memory_space<vmem>>, %arg9: memref<128x32xbf16, #tpu.memory_space<vmem>>, %arg10: memref<1x32xf32, #tpu.memory_space<vmem>>, %arg11: memref<1x32xf32, #tpu.memory_space<vmem>>, %arg12: memref<1x32xf32, #tpu.memory_space<vmem>>, %arg13: memref<16x32xf32, #tpu.memory_space<vmem>>) attributes {dimension_semantics = [#tpu.dimension_semantics<parallel>], iteration_bounds = array<i64: 1>, scalar_prefetch = 0 : i64, scratch_operands = 0 : i64, tpu.core_type = #tpu.core_type<tc>, window_params = [{transform_indices = @transform_0, window_bounds = array<i64: 16, 32>}, {pipeline_mode = #tpu.pipeline_mode<synchronous>, transform_indices = @transform_1, window_bounds = array<i64: 32, 128>}, {pipeline_mode = #tpu.pipeline_mode<synchronous>, transform_indices = @transform_2, window_bounds = array<i64: 32, 32>}, {pipeline_mode = #tpu.pipeline_mode<synchronous>, transform_indices = @transform_3, window_bounds = array<i64: 1, 32>}, {pipeline_mode = #tpu.pipeline_mode<synchronous>, transform_indices = @transform_4, window_bounds = array<i64: 1, 32>}, {pipeline_mode = #tpu.pipeline_mode<synchronous>, transform_indices = @transform_5, window_bounds = array<i64: 1, 32>}, {pipeline_mode = #tpu.pipeline_mode<synchronous>, transform_indices = @transform_6, window_bounds = array<i64: 32, 128>}, {pipeline_mode = #tpu.pipeline_mode<synchronous>, transform_indices = @transform_7, window_bounds = array<i64: 1, 128>}, {pipeline_mode = #tpu.pipeline_mode<synchronous>, transform_indices = @transform_8, window_bounds = array<i64: 128, 32>}, {pipeline_mode = #tpu.pipeline_mode<synchronous>, transform_indices = @transform_9, window_bounds = array<i64: 1, 32>}, {pipeline_mode = #tpu.pipeline_mode<synchronous>, transform_indices = @transform_10, window_bounds = array<i64: 1, 32>}, {pipeline_mode = #tpu.pipeline_mode<synchronous>, transform_indices = @transform_11, window_bounds = array<i64: 1, 32>}, {transform_indices = @transform_12, window_bounds = array<i64: 16, 32>}]} {
    %c0 = arith.constant 0 : index
    %c0_0 = arith.constant 0 : index
    %0 = vector.load %arg1[%c0, %c0_0] : memref<16x32xf32, #tpu.memory_space<vmem>>, vector<16x32xf32>
    %1 = arith.truncf %0 : vector<16x32xf32> to vector<16x32xbf16>
    %c0_1 = arith.constant 0 : index
    %c0_2 = arith.constant 0 : index
    %2 = vector.load %arg2[%c0_1, %c0_2] : memref<32x128xbf16, #tpu.memory_space<vmem>>, vector<32x128xbf16>
    %cst = arith.constant dense<0.000000e+00> : vector<16x128xf32>
    %3 = tpu.matmul %1, %2, %cst {dimension_numbers = #tpu.dot_dimension_numbers<[1], [0], [0], [1], [0, 0, 1, 1], [], []>} : vector<16x32xbf16>, vector<32x128xbf16>, vector<16x128xf32> -> vector<16x128xf32>
    %4 = vector.shape_cast %3 : vector<16x128xf32> to vector<2x8x128xf32>
    %5 = vector.extract_strided_slice %4 {offsets = [0, 0, 0], sizes = [2, 8, 8], strides = [1, 1, 1]} : vector<2x8x128xf32> to vector<2x8x8xf32>
    %6 = vector.extract_strided_slice %4 {offsets = [0, 0, 32], sizes = [2, 8, 8], strides = [1, 1, 1]} : vector<2x8x128xf32> to vector<2x8x8xf32>
    %7 = vector.extract_strided_slice %4 {offsets = [0, 0, 64], sizes = [2, 8, 8], strides = [1, 1, 1]} : vector<2x8x128xf32> to vector<2x8x8xf32>
    "tpu.trace_start"() <{level = 10 : i32, message = "bqd,bkd->bqk"}> : () -> ()
    %cst_3 = arith.constant dense<0.000000e+00> : vector<2x8x8xf32>
    %8 = tpu.matmul %5, %6, %cst_3 {dimension_numbers = #tpu.dot_dimension_numbers<[2], [2], [1], [1], [0, 0, 0, 1, 1, 1], [0], [0]>} : vector<2x8x8xf32>, vector<2x8x8xf32>, vector<2x8x8xf32> -> vector<2x8x8xf32>
    "tpu.trace_stop"() : () -> ()
    %cst_4 = arith.constant dense<0xFF800000> : vector<2x8xf32>
    %9 = vector.multi_reduction <maximumf>, %8, %cst_4 [2] : vector<2x8x8xf32> to vector<2x8xf32>
    %10 = vector.shape_cast %9 : vector<2x8xf32> to vector<2x8x1xf32>
    %11 = vector.broadcast %10 : vector<2x8x1xf32> to vector<2x8x8xf32>
    %12 = arith.subf %8, %11 : vector<2x8x8xf32>
    %13 = math.exp %12 : vector<2x8x8xf32>
    %cst_5 = arith.constant dense<0.000000e+00> : vector<2x8xf32>
    %14 = vector.multi_reduction <add>, %13, %cst_5 [2] : vector<2x8x8xf32> to vector<2x8xf32>
    %15 = vector.shape_cast %14 : vector<2x8xf32> to vector<2x8x1xf32>
    %16 = tpu.reciprocal %15 {approx = true} : vector<2x8x1xf32> -> vector<2x8x1xf32>
    %17 = vector.broadcast %16 : vector<2x8x1xf32> to vector<2x8x8xf32>
    %18 = arith.mulf %13, %17 : vector<2x8x8xf32>
    "tpu.trace_start"() <{level = 10 : i32, message = "bqk,bkd->bqd"}> : () -> ()
    %cst_6 = arith.constant dense<0.000000e+00> : vector<2x8x8xf32>
    %19 = tpu.matmul %18, %7, %cst_6 {dimension_numbers = #tpu.dot_dimension_numbers<[2], [1], [1], [2], [0, 0, 0, 1, 1, 2], [0], [0]>} : vector<2x8x8xf32>, vector<2x8x8xf32>, vector<2x8x8xf32> -> vector<2x8x8xf32>
    "tpu.trace_stop"() : () -> ()
    %20 = vector.extract_strided_slice %4 {offsets = [0, 0, 8], sizes = [2, 8, 8], strides = [1, 1, 1]} : vector<2x8x128xf32> to vector<2x8x8xf32>
    %21 = vector.extract_strided_slice %4 {offsets = [0, 0, 40], sizes = [2, 8, 8], strides = [1, 1, 1]} : vector<2x8x128xf32> to vector<2x8x8xf32>
    %22 = vector.extract_strided_slice %4 {offsets = [0, 0, 72], sizes = [2, 8, 8], strides = [1, 1, 1]} : vector<2x8x128xf32> to vector<2x8x8xf32>
    "tpu.trace_start"() <{level = 10 : i32, message = "bqd,bkd->bqk"}> : () -> ()
    %cst_7 = arith.constant dense<0.000000e+00> : vector<2x8x8xf32>
    %23 = tpu.matmul %20, %21, %cst_7 {dimension_numbers = #tpu.dot_dimension_numbers<[2], [2], [1], [1], [0, 0, 0, 1, 1, 1], [0], [0]>} : vector<2x8x8xf32>, vector<2x8x8xf32>, vector<2x8x8xf32> -> vector<2x8x8xf32>
    "tpu.trace_stop"() : () -> ()
    %cst_8 = arith.constant dense<0xFF800000> : vector<2x8xf32>
    %24 = vector.multi_reduction <maximumf>, %23, %cst_8 [2] : vector<2x8x8xf32> to vector<2x8xf32>
    %25 = vector.shape_cast %24 : vector<2x8xf32> to vector<2x8x1xf32>
    %26 = vector.broadcast %25 : vector<2x8x1xf32> to vector<2x8x8xf32>
    %27 = arith.subf %23, %26 : vector<2x8x8xf32>
    %28 = math.exp %27 : vector<2x8x8xf32>
    %cst_9 = arith.constant dense<0.000000e+00> : vector<2x8xf32>
    %29 = vector.multi_reduction <add>, %28, %cst_9 [2] : vector<2x8x8xf32> to vector<2x8xf32>
    %30 = vector.shape_cast %29 : vector<2x8xf32> to vector<2x8x1xf32>
    %31 = tpu.reciprocal %30 {approx = true} : vector<2x8x1xf32> -> vector<2x8x1xf32>
    %32 = vector.broadcast %31 : vector<2x8x1xf32> to vector<2x8x8xf32>
    %33 = arith.mulf %28, %32 : vector<2x8x8xf32>
    "tpu.trace_start"() <{level = 10 : i32, message = "bqk,bkd->bqd"}> : () -> ()
    %cst_10 = arith.constant dense<0.000000e+00> : vector<2x8x8xf32>
    %34 = tpu.matmul %33, %22, %cst_10 {dimension_numbers = #tpu.dot_dimension_numbers<[2], [1], [1], [2], [0, 0, 0, 1, 1, 2], [0], [0]>} : vector<2x8x8xf32>, vector<2x8x8xf32>, vector<2x8x8xf32> -> vector<2x8x8xf32>
    "tpu.trace_stop"() : () -> ()
    %35 = vector.extract_strided_slice %4 {offsets = [0, 0, 16], sizes = [2, 8, 8], strides = [1, 1, 1]} : vector<2x8x128xf32> to vector<2x8x8xf32>
    %36 = vector.extract_strided_slice %4 {offsets = [0, 0, 48], sizes = [2, 8, 8], strides = [1, 1, 1]} : vector<2x8x128xf32> to vector<2x8x8xf32>
    %37 = vector.extract_strided_slice %4 {offsets = [0, 0, 80], sizes = [2, 8, 8], strides = [1, 1, 1]} : vector<2x8x128xf32> to vector<2x8x8xf32>
    "tpu.trace_start"() <{level = 10 : i32, message = "bqd,bkd->bqk"}> : () -> ()
    %cst_11 = arith.constant dense<0.000000e+00> : vector<2x8x8xf32>
    %38 = tpu.matmul %35, %36, %cst_11 {dimension_numbers = #tpu.dot_dimension_numbers<[2], [2], [1], [1], [0, 0, 0, 1, 1, 1], [0], [0]>} : vector<2x8x8xf32>, vector<2x8x8xf32>, vector<2x8x8xf32> -> vector<2x8x8xf32>
    "tpu.trace_stop"() : () -> ()
    %cst_12 = arith.constant dense<0xFF800000> : vector<2x8xf32>
    %39 = vector.multi_reduction <maximumf>, %38, %cst_12 [2] : vector<2x8x8xf32> to vector<2x8xf32>
    %40 = vector.shape_cast %39 : vector<2x8xf32> to vector<2x8x1xf32>
    %41 = vector.broadcast %40 : vector<2x8x1xf32> to vector<2x8x8xf32>
    %42 = arith.subf %38, %41 : vector<2x8x8xf32>
    %43 = math.exp %42 : vector<2x8x8xf32>
    %cst_13 = arith.constant dense<0.000000e+00> : vector<2x8xf32>
    %44 = vector.multi_reduction <add>, %43, %cst_13 [2] : vector<2x8x8xf32> to vector<2x8xf32>
    %45 = vector.shape_cast %44 : vector<2x8xf32> to vector<2x8x1xf32>
    %46 = tpu.reciprocal %45 {approx = true} : vector<2x8x1xf32> -> vector<2x8x1xf32>
    %47 = vector.broadcast %46 : vector<2x8x1xf32> to vector<2x8x8xf32>
    %48 = arith.mulf %43, %47 : vector<2x8x8xf32>
    "tpu.trace_start"() <{level = 10 : i32, message = "bqk,bkd->bqd"}> : () -> ()
    %cst_14 = arith.constant dense<0.000000e+00> : vector<2x8x8xf32>
    %49 = tpu.matmul %48, %37, %cst_14 {dimension_numbers = #tpu.dot_dimension_numbers<[2], [1], [1], [2], [0, 0, 0, 1, 1, 2], [0], [0]>} : vector<2x8x8xf32>, vector<2x8x8xf32>, vector<2x8x8xf32> -> vector<2x8x8xf32>
    "tpu.trace_stop"() : () -> ()
    %50 = vector.extract_strided_slice %4 {offsets = [0, 0, 24], sizes = [2, 8, 8], strides = [1, 1, 1]} : vector<2x8x128xf32> to vector<2x8x8xf32>
    %51 = vector.extract_strided_slice %4 {offsets = [0, 0, 56], sizes = [2, 8, 8], strides = [1, 1, 1]} : vector<2x8x128xf32> to vector<2x8x8xf32>
    %52 = vector.extract_strided_slice %4 {offsets = [0, 0, 88], sizes = [2, 8, 8], strides = [1, 1, 1]} : vector<2x8x128xf32> to vector<2x8x8xf32>
    "tpu.trace_start"() <{level = 10 : i32, message = "bqd,bkd->bqk"}> : () -> ()
    %cst_15 = arith.constant dense<0.000000e+00> : vector<2x8x8xf32>
    %53 = tpu.matmul %50, %51, %cst_15 {dimension_numbers = #tpu.dot_dimension_numbers<[2], [2], [1], [1], [0, 0, 0, 1, 1, 1], [0], [0]>} : vector<2x8x8xf32>, vector<2x8x8xf32>, vector<2x8x8xf32> -> vector<2x8x8xf32>
    "tpu.trace_stop"() : () -> ()
    %cst_16 = arith.constant dense<0xFF800000> : vector<2x8xf32>
    %54 = vector.multi_reduction <maximumf>, %53, %cst_16 [2] : vector<2x8x8xf32> to vector<2x8xf32>
    %55 = vector.shape_cast %54 : vector<2x8xf32> to vector<2x8x1xf32>
    %56 = vector.broadcast %55 : vector<2x8x1xf32> to vector<2x8x8xf32>
    %57 = arith.subf %53, %56 : vector<2x8x8xf32>
    %58 = math.exp %57 : vector<2x8x8xf32>
    %cst_17 = arith.constant dense<0.000000e+00> : vector<2x8xf32>
    %59 = vector.multi_reduction <add>, %58, %cst_17 [2] : vector<2x8x8xf32> to vector<2x8xf32>
    %60 = vector.shape_cast %59 : vector<2x8xf32> to vector<2x8x1xf32>
    %61 = tpu.reciprocal %60 {approx = true} : vector<2x8x1xf32> -> vector<2x8x1xf32>
    %62 = vector.broadcast %61 : vector<2x8x1xf32> to vector<2x8x8xf32>
    %63 = arith.mulf %58, %62 : vector<2x8x8xf32>
    "tpu.trace_start"() <{level = 10 : i32, message = "bqk,bkd->bqd"}> : () -> ()
    %cst_18 = arith.constant dense<0.000000e+00> : vector<2x8x8xf32>
    %64 = tpu.matmul %63, %52, %cst_18 {dimension_numbers = #tpu.dot_dimension_numbers<[2], [1], [1], [2], [0, 0, 0, 1, 1, 2], [0], [0]>} : vector<2x8x8xf32>, vector<2x8x8xf32>, vector<2x8x8xf32> -> vector<2x8x8xf32>
    "tpu.trace_stop"() : () -> ()
    %65 = tpu.concatenate %19, %34, %49, %64 in 2 : vector<2x8x8xf32>, vector<2x8x8xf32>, vector<2x8x8xf32>, vector<2x8x8xf32> -> vector<2x8x32xf32>
    %66 = vector.shape_cast %65 : vector<2x8x32xf32> to vector<16x32xf32>
    %67 = arith.truncf %66 : vector<16x32xf32> to vector<16x32xbf16>
    %c0_19 = arith.constant 0 : index
    %c0_20 = arith.constant 0 : index
    %68 = vector.load %arg3[%c0_19, %c0_20] : memref<32x32xbf16, #tpu.memory_space<vmem>>, vector<32x32xbf16>
    %cst_21 = arith.constant dense<0.000000e+00> : vector<16x32xf32>
    %69 = tpu.matmul %67, %68, %cst_21 {dimension_numbers = #tpu.dot_dimension_numbers<[1], [0], [0], [1], [0, 0, 1, 1], [], []>} : vector<16x32xbf16>, vector<32x32xbf16>, vector<16x32xf32> -> vector<16x32xf32>
    %c0_22 = arith.constant 0 : index
    %c0_23 = arith.constant 0 : index
    %70 = vector.load %arg4[%c0_22, %c0_23] : memref<1x32xf32, #tpu.memory_space<vmem>>, vector<1x32xf32>
    %71 = vector.broadcast %70 : vector<1x32xf32> to vector<16x32xf32>
    %72 = arith.addf %69, %71 : vector<16x32xf32>
    %73 = arith.addf %0, %72 : vector<16x32xf32>
    %c0_24 = arith.constant 0 : index
    %c0_25 = arith.constant 0 : index
    %74 = vector.load %arg5[%c0_24, %c0_25] : memref<1x32xf32, #tpu.memory_space<vmem>>, vector<1x32xf32>
    %c0_26 = arith.constant 0 : index
    %c0_27 = arith.constant 0 : index
    %75 = vector.load %arg6[%c0_26, %c0_27] : memref<1x32xf32, #tpu.memory_space<vmem>>, vector<1x32xf32>
    %cst_28 = arith.constant dense<0.000000e+00> : vector<16xf32>
    %76 = vector.multi_reduction <add>, %73, %cst_28 [1] : vector<16x32xf32> to vector<16xf32>
    %77 = vector.shape_cast %76 : vector<16xf32> to vector<16x1xf32>
    %cst_29 = arith.constant 3.200000e+01 : f32
    %78 = vector.broadcast %cst_29 : f32 to vector<16x1xf32>
    %79 = arith.divf %77, %78 : vector<16x1xf32>
    %80 = vector.broadcast %79 : vector<16x1xf32> to vector<16x32xf32>
    %81 = arith.subf %73, %80 : vector<16x32xf32>
    %82 = arith.mulf %81, %81 : vector<16x32xf32>
    %cst_30 = arith.constant dense<0.000000e+00> : vector<16xf32>
    %83 = vector.multi_reduction <add>, %82, %cst_30 [1] : vector<16x32xf32> to vector<16xf32>
    %84 = vector.shape_cast %83 : vector<16xf32> to vector<16x1xf32>
    %cst_31 = arith.constant 3.200000e+01 : f32
    %85 = vector.broadcast %cst_31 : f32 to vector<16x1xf32>
    %86 = arith.divf %84, %85 : vector<16x1xf32>
    %87 = vector.broadcast %79 : vector<16x1xf32> to vector<16x32xf32>
    %88 = arith.subf %73, %87 : vector<16x32xf32>
    %cst_32 = arith.constant 9.99999974E-6 : f32
    %89 = vector.broadcast %cst_32 : f32 to vector<16x1xf32>
    %90 = arith.addf %86, %89 : vector<16x1xf32>
    %91 = math.rsqrt %90 : vector<16x1xf32>
    %92 = vector.broadcast %91 : vector<16x1xf32> to vector<16x32xf32>
    %93 = arith.mulf %88, %92 : vector<16x32xf32>
    %94 = vector.broadcast %74 : vector<1x32xf32> to vector<16x32xf32>
    %95 = arith.mulf %93, %94 : vector<16x32xf32>
    %96 = vector.broadcast %75 : vector<1x32xf32> to vector<16x32xf32>
    %97 = arith.addf %95, %96 : vector<16x32xf32>
    %98 = arith.truncf %97 : vector<16x32xf32> to vector<16x32xbf16>
    %c0_33 = arith.constant 0 : index
    %c0_34 = arith.constant 0 : index
    %99 = vector.load %arg7[%c0_33, %c0_34] : memref<32x128xbf16, #tpu.memory_space<vmem>>, vector<32x128xbf16>
    %cst_35 = arith.constant dense<0.000000e+00> : vector<16x128xf32>
    %100 = tpu.matmul %98, %99, %cst_35 {dimension_numbers = #tpu.dot_dimension_numbers<[1], [0], [0], [1], [0, 0, 1, 1], [], []>} : vector<16x32xbf16>, vector<32x128xbf16>, vector<16x128xf32> -> vector<16x128xf32>
    %c0_36 = arith.constant 0 : index
    %c0_37 = arith.constant 0 : index
    %101 = vector.load %arg8[%c0_36, %c0_37] : memref<1x128xf32, #tpu.memory_space<vmem>>, vector<1x128xf32>
    %102 = vector.broadcast %101 : vector<1x128xf32> to vector<16x128xf32>
    %103 = arith.addf %100, %102 : vector<16x128xf32>
    %cst_38 = arith.constant 0.000000e+00 : f32
    %104 = vector.broadcast %cst_38 : f32 to vector<16x128xf32>
    %105 = arith.maximumf %103, %104 : vector<16x128xf32>
    %106 = arith.truncf %105 : vector<16x128xf32> to vector<16x128xbf16>
    %c0_39 = arith.constant 0 : index
    %c0_40 = arith.constant 0 : index
    %107 = vector.load %arg9[%c0_39, %c0_40] : memref<128x32xbf16, #tpu.memory_space<vmem>>, vector<128x32xbf16>
    %cst_41 = arith.constant dense<0.000000e+00> : vector<16x32xf32>
    %108 = tpu.matmul %106, %107, %cst_41 {dimension_numbers = #tpu.dot_dimension_numbers<[1], [0], [0], [1], [0, 0, 1, 1], [], []>} : vector<16x128xbf16>, vector<128x32xbf16>, vector<16x32xf32> -> vector<16x32xf32>
    %c0_42 = arith.constant 0 : index
    %c0_43 = arith.constant 0 : index
    %109 = vector.load %arg10[%c0_42, %c0_43] : memref<1x32xf32, #tpu.memory_space<vmem>>, vector<1x32xf32>
    %110 = vector.broadcast %109 : vector<1x32xf32> to vector<16x32xf32>
    %111 = arith.addf %108, %110 : vector<16x32xf32>
    %112 = arith.addf %97, %111 : vector<16x32xf32>
    %c0_44 = arith.constant 0 : index
    %c0_45 = arith.constant 0 : index
    %113 = vector.load %arg11[%c0_44, %c0_45] : memref<1x32xf32, #tpu.memory_space<vmem>>, vector<1x32xf32>
    %c0_46 = arith.constant 0 : index
    %c0_47 = arith.constant 0 : index
    %114 = vector.load %arg12[%c0_46, %c0_47] : memref<1x32xf32, #tpu.memory_space<vmem>>, vector<1x32xf32>
    %cst_48 = arith.constant dense<0.000000e+00> : vector<16xf32>
    %115 = vector.multi_reduction <add>, %112, %cst_48 [1] : vector<16x32xf32> to vector<16xf32>
    %116 = vector.shape_cast %115 : vector<16xf32> to vector<16x1xf32>
    %cst_49 = arith.constant 3.200000e+01 : f32
    %117 = vector.broadcast %cst_49 : f32 to vector<16x1xf32>
    %118 = arith.divf %116, %117 : vector<16x1xf32>
    %119 = vector.broadcast %118 : vector<16x1xf32> to vector<16x32xf32>
    %120 = arith.subf %112, %119 : vector<16x32xf32>
    %121 = arith.mulf %120, %120 : vector<16x32xf32>
    %cst_50 = arith.constant dense<0.000000e+00> : vector<16xf32>
    %122 = vector.multi_reduction <add>, %121, %cst_50 [1] : vector<16x32xf32> to vector<16xf32>
    %123 = vector.shape_cast %122 : vector<16xf32> to vector<16x1xf32>
    %cst_51 = arith.constant 3.200000e+01 : f32
    %124 = vector.broadcast %cst_51 : f32 to vector<16x1xf32>
    %125 = arith.divf %123, %124 : vector<16x1xf32>
    %126 = vector.broadcast %118 : vector<16x1xf32> to vector<16x32xf32>
    %127 = arith.subf %112, %126 : vector<16x32xf32>
    %cst_52 = arith.constant 9.99999974E-6 : f32
    %128 = vector.broadcast %cst_52 : f32 to vector<16x1xf32>
    %129 = arith.addf %125, %128 : vector<16x1xf32>
    %130 = math.rsqrt %129 : vector<16x1xf32>
    %131 = vector.broadcast %130 : vector<16x1xf32> to vector<16x32xf32>
    %132 = arith.mulf %127, %131 : vector<16x32xf32>
    %133 = vector.broadcast %113 : vector<1x32xf32> to vector<16x32xf32>
    %134 = arith.mulf %132, %133 : vector<16x32xf32>
    %135 = vector.broadcast %114 : vector<1x32xf32> to vector<16x32xf32>
    %136 = arith.addf %134, %135 : vector<16x32xf32>
    %c0_53 = arith.constant 0 : index
    %c0_54 = arith.constant 0 : index
    %137 = vector.load %arg13[%c0_53, %c0_54] : memref<16x32xf32, #tpu.memory_space<vmem>>, vector<16x32xf32>
    tpu.vector_store %arg13[%c0_53, %c0_54], %136 {strides = array<i32>} : memref<16x32xf32, #tpu.memory_space<vmem>>, vector<16x32xf32>,
    return
  }
  func.func @transform_0(%arg0: i32) -> (i32, i32) {
    %c0_i32 = arith.constant 0 : i32
    %c0_i32_0 = arith.constant 0 : i32
    return %arg0, %c0_i32 : i32, i32
  }
  func.func @transform_1(%arg0: i32) -> (i32, i32) {
    %c0_i32 = arith.constant 0 : i32
    %c0_i32_0 = arith.constant 0 : i32
    %c0_i32_1 = arith.constant 0 : i32
    return %c0_i32, %c0_i32_0 : i32, i32
  }
  func.func @transform_2(%arg0: i32) -> (i32, i32) {
    %c0_i32 = arith.constant 0 : i32
    %c0_i32_0 = arith.constant 0 : i32
    %c0_i32_1 = arith.constant 0 : i32
    return %c0_i32, %c0_i32_0 : i32, i32
  }
  func.func @transform_3(%arg0: i32) -> (i32, i32) {
    %c0_i32 = arith.constant 0 : i32
    %c0_i32_0 = arith.constant 0 : i32
    %c0_i32_1 = arith.constant 0 : i32
    return %c0_i32, %c0_i32_0 : i32, i32
  }
  func.func @transform_4(%arg0: i32) -> (i32, i32) {
    %c0_i32 = arith.constant 0 : i32
    %c0_i32_0 = arith.constant 0 : i32
    %c0_i32_1 = arith.constant 0 : i32
    return %c0_i32, %c0_i32_0 : i32, i32
  }
  func.func @transform_5(%arg0: i32) -> (i32, i32) {
    %c0_i32 = arith.constant 0 : i32
    %c0_i32_0 = arith.constant 0 : i32
    %c0_i32_1 = arith.constant 0 : i32
    return %c0_i32, %c0_i32_0 : i32, i32
  }
  func.func @transform_6(%arg0: i32) -> (i32, i32) {
    %c0_i32 = arith.constant 0 : i32
    %c0_i32_0 = arith.constant 0 : i32
    %c0_i32_1 = arith.constant 0 : i32
    return %c0_i32, %c0_i32_0 : i32, i32
  }
  func.func @transform_7(%arg0: i32) -> (i32, i32) {
    %c0_i32 = arith.constant 0 : i32
    %c0_i32_0 = arith.constant 0 : i32
    %c0_i32_1 = arith.constant 0 : i32
    return %c0_i32, %c0_i32_0 : i32, i32
  }
  func.func @transform_8(%arg0: i32) -> (i32, i32) {
    %c0_i32 = arith.constant 0 : i32
    %c0_i32_0 = arith.constant 0 : i32
    %c0_i32_1 = arith.constant 0 : i32
    return %c0_i32, %c0_i32_0 : i32, i32
  }
  func.func @transform_9(%arg0: i32) -> (i32, i32) {
    %c0_i32 = arith.constant 0 : i32
    %c0_i32_0 = arith.constant 0 : i32
    %c0_i32_1 = arith.constant 0 : i32
    return %c0_i32, %c0_i32_0 : i32, i32
  }
  func.func @transform_10(%arg0: i32) -> (i32, i32) {
    %c0_i32 = arith.constant 0 : i32
    %c0_i32_0 = arith.constant 0 : i32
    %c0_i32_1 = arith.constant 0 : i32
    return %c0_i32, %c0_i32_0 : i32, i32
  }
  func.func @transform_11(%arg0: i32) -> (i32, i32) {
    %c0_i32 = arith.constant 0 : i32
    %c0_i32_0 = arith.constant 0 : i32
    %c0_i32_1 = arith.constant 0 : i32
    return %c0_i32, %c0_i32_0 : i32, i32
  }
  func.func @transform_12(%arg0: i32) -> (i32, i32) {
    %c0_i32 = arith.constant 0 : i32
    %c0_i32_0 = arith.constant 0 : i32
    return %arg0, %c0_i32 : i32, i32
  }
}

</mosaic_0001>

<llo_original>
// kernel: tpu_custom_call.1
$region0: #{tpu_custom_call.1}
  #allocation0 [shape = 'u32[]', space=smem, size = 0x4, offset = 0x4, fixed_abs, tag = 'smem constant byte address 0x4 - core index']
  #allocation1 [shape = 'u32[144,128]{1,0:T(1,128)}', space=vmem, size = 0x12000, scoped, tag = 'internal scratch']
  %s0 = inlined_call_operand.vmem [shape: f32[16,32], index: 0, kind: input, shape index: {}]
  %s1 = inlined_call_operand.vmem [shape: bf16[32,128], index: 1, kind: input, shape index: {}]
  %s2 = inlined_call_operand.vmem [shape: bf16[32,32], index: 2, kind: input, shape index: {}]
  %s3 = inlined_call_operand.vmem [shape: f32[1,32], index: 3, kind: input, shape index: {}]
  %s4 = inlined_call_operand.vmem [shape: f32[1,32], index: 4, kind: input, shape index: {}]
  %s5 = inlined_call_operand.vmem [shape: f32[1,32], index: 5, kind: input, shape index: {}]
  %s6 = inlined_call_operand.vmem [shape: bf16[32,128], index: 6, kind: input, shape index: {}]
  %s7 = inlined_call_operand.vmem [shape: f32[1,128], index: 7, kind: input, shape index: {}]
  %s8 = inlined_call_operand.vmem [shape: bf16[128,32], index: 8, kind: input, shape index: {}]
  %s9 = inlined_call_operand.vmem [shape: f32[1,32], index: 9, kind: input, shape index: {}]
  %s10 = inlined_call_operand.vmem [shape: f32[1,32], index: 10, kind: input, shape index: {}]
  %s11 = inlined_call_operand.vmem [shape: f32[1,32], index: 11, kind: input, shape index: {}]
  %s12 = inlined_call_operand.hbm [shape: f32[16,32], index: 12, kind: output, shape index: {}]
  %s13 = sld [smem:[#allocation0]]
  $region58: #{tpu_custom_call.1} parent=0
    _
  %s15 = ssub.s32 1, %s13
  %s16 = scalar_select 0, %s15, %s13
  $region1: #{tpu_custom_call.1} parent=0
    #allocation2 [shape = 'u8[8192]{0}', space=vmem, size = 0x2000, scoped, tag = 'output window, operand 0, single buffered']
    #allocation3 [shape = 's32[1]{0}', space=sflag, size = 0x4, scoped, tag = 'scoped memory for tpu_custom_call.1']
    %17 = vsyncpa [#allocation3], 0
    // Predicated region
    $region2: #{tpu_custom_call.1} parent=1 // pred_check
      _
    $region3: #{tpu_custom_call.1} parent=1 // pred_check_branch
      %19 = sbr.rel (0) target = $region5
    $region4: #{tpu_custom_call.1} parent=1 // pred_region
      _
    $region5: #{tpu_custom_call.1} parent=1 // pred_fallthru
      _
    // Predicated region
    $region6: #{tpu_custom_call.1} parent=1 // pred_check
      _
    $region7: #{tpu_custom_call.1} parent=1 // pred_check_branch
      %21 = sbr.rel (0) target = $region9
    $region8: #{tpu_custom_call.1} parent=1 // pred_region
      _
    $region9: #{tpu_custom_call.1} parent=1 // pred_fallthru
      _
    // Predicated region
    $region10: #{tpu_custom_call.1} parent=1 // pred_check
      _
    $region11: #{tpu_custom_call.1} parent=1 // pred_check_branch
      %23 = sbr.rel (0) target = $region13
    $region12: #{tpu_custom_call.1} parent=1 // pred_region
      _
    $region13: #{tpu_custom_call.1} parent=1 // pred_fallthru
      _
    // Predicated region
    $region14: #{tpu_custom_call.1} parent=1 // pred_check
      _
    $region15: #{tpu_custom_call.1} parent=1 // pred_check_branch
      %25 = sbr.rel (0) target = $region17
    $region16: #{tpu_custom_call.1} parent=1 // pred_region
      _
    $region17: #{tpu_custom_call.1} parent=1 // pred_fallthru
      _
    // Predicated region
    $region18: #{tpu_custom_call.1} parent=1 // pred_check
      _
    $region19: #{tpu_custom_call.1} parent=1 // pred_check_branch
      %27 = sbr.rel (0) target = $region21
    $region20: #{tpu_custom_call.1} parent=1 // pred_region
      _
    $region21: #{tpu_custom_call.1} parent=1 // pred_fallthru
      _
    // Predicated region
    $region22: #{tpu_custom_call.1} parent=1 // pred_check
      _
    $region23: #{tpu_custom_call.1} parent=1 // pred_check_branch
      %29 = sbr.rel (0) target = $region25
    $region24: #{tpu_custom_call.1} parent=1 // pred_region
      _
    $region25: #{tpu_custom_call.1} parent=1 // pred_fallthru
      _
    // Predicated region
    $region26: #{tpu_custom_call.1} parent=1 // pred_check
      _
    $region27: #{tpu_custom_call.1} parent=1 // pred_check_branch
      %31 = sbr.rel (0) target = $region29
    $region28: #{tpu_custom_call.1} parent=1 // pred_region
      _
    $region29: #{tpu_custom_call.1} parent=1 // pred_fallthru
      _
    // Predicated region
    $region30: #{tpu_custom_call.1} parent=1 // pred_check
      _
    $region31: #{tpu_custom_call.1} parent=1 // pred_check_branch
      %33 = sbr.rel (0) target = $region33
    $region32: #{tpu_custom_call.1} parent=1 // pred_region
      _
    $region33: #{tpu_custom_call.1} parent=1 // pred_fallthru
      _
    // Predicated region
    $region34: #{tpu_custom_call.1} parent=1 // pred_check
      _
    $region35: #{tpu_custom_call.1} parent=1 // pred_check_branch
      %35 = sbr.rel (0) target = $region37
    $region36: #{tpu_custom_call.1} parent=1 // pred_region
      _
    $region37: #{tpu_custom_call.1} parent=1 // pred_fallthru
      _
    // Predicated region
    $region38: #{tpu_custom_call.1} parent=1 // pred_check
      _
    $region39: #{tpu_custom_call.1} parent=1 // pred_check_branch
      %37 = sbr.rel (0) target = $region41
    $region40: #{tpu_custom_call.1} parent=1 // pred_region
      _
    $region41: #{tpu_custom_call.1} parent=1 // pred_fallthru
      _
    // Predicated region
    $region42: #{tpu_custom_call.1} parent=1 // pred_check
      _
    $region43: #{tpu_custom_call.1} parent=1 // pred_check_branch
      %39 = sbr.rel (0) target = $region45
    $region44: #{tpu_custom_call.1} parent=1 // pred_region
      _
    $region45: #{tpu_custom_call.1} parent=1 // pred_fallthru
      _
    // Predicated region
    $region46: #{tpu_custom_call.1} parent=1 // pred_check
      _
    $region47: #{tpu_custom_call.1} parent=1 // pred_check_branch
      %41 = sbr.rel (0) target = $region49
    $region48: #{tpu_custom_call.1} parent=1 // pred_region
      _
    $region49: #{tpu_custom_call.1} parent=1 // pred_fallthru
      _
    %v43 = vld [vmem:[%s0] sm:$0xff]
    %v44 = vld [vmem:[%s0 + $0x8] sm:$0xff]
    %v45 = vpack.c.bf16 %v44, %v43
    %v46 = vld [vmem:[%s1] sm:$0xf]
    %v47 = vld [vmem:[%s1 + $0x4] sm:$0xf]
    %v48 = vld [vmem:[%s1 + $0x8] sm:$0xf]
    %v49 = vld [vmem:[%s1 + $0xc] sm:$0xf]
    %v54 = vunpack.c.l.b16 %v46
    %v55 = vunpack.c.l.b16 %v47
    %v56 = vunpack.c.l.b16 %v48
    %v57 = vunpack.c.l.b16 %v49
    %v58 = vpack.c.b16 %v55, %v54
    %v59 = vpack.c.b16 %v57, %v56
    %vm62 = vcmask 261120
    %v64 = vsel %vm62, %v45, 0
    %66 = vmatprep.subr.bf16.mxu0 0
    %67 = vmatpush1.bf16.msra.mxu0 0
    %68 = vmatprep.subr.bf16.mxu0 0
    %69 = vmatpush1.bf16.msra.mxu0 0
    %70 = vmatprep.subr.bf16.mxu0 0
    %71 = vmatpush1.bf16.msra.mxu0 0
    %72 = vmatprep.subr.bf16.mxu0 0
    %73 = vmatpush1.bf16.msra.mxu0 0
    %74 = vmatprep.subr.bf16.mxu0 0
    %75 = vmatpush1.bf16.msra.mxu0 0
    %76 = vmatprep.subr.bf16.mxu0 0
    %77 = vmatpush1.bf16.msra.mxu0 0
    %78 = vmatprep.subr.bf16.mxu0 0
    %79 = vmatpush1.bf16.msra.mxu0 %v59
    %80 = vmatprep.subr.bf16.mxu0 0
    %81 = vmatpush1.bf16.msra.mxu0 %v58
    %82 = vmatprep.subr.bf16.mxu0 0
    %83 = vmatpush2.bf16.msra.mxu0 0
    %84 = vmatprep.subr.bf16.mxu0 0
    %85 = vmatpush2.bf16.msra.mxu0 0
    %86 = vmatprep.subr.bf16.mxu0 0
    %87 = vmatpush2.bf16.msra.mxu0 0
    %88 = vmatprep.subr.bf16.mxu0 0
    %89 = vmatpush2.bf16.msra.mxu0 0
    %90 = vmatprep.subr.bf16.mxu0 0
    %91 = vmatpush2.bf16.msra.mxu0 0
    %92 = vmatprep.subr.bf16.mxu0 0
    %93 = vmatpush2.bf16.msra.mxu0 0
    %94 = vmatprep.subr.bf16.mxu0 0
    %95 = vmatpush2.bf16.msra.mxu0 0
    %96 = vmatprep.subr.bf16.mxu0 0
    %97 = vmatpush2.bf16.msra.mxu0 0
    %98 = vmatprep.mubr.bf16.mxu0 0
    %99 = vmatmul.mubr.bf16.gmra.mxu0 %v64
    %v100 = vpop.f32.mrf.mxu0
    %v101 = vadd.f32 0.0, %v100
    %v102 = vpop.f32.mrf.mxu0
    %v103 = vpop.f32.mrf.mxu0
    %v104 = vadd.f32 0.0, %v103
    %v105 = vpop.f32.mrf.mxu0
    %106 = vdwg.mxu0
    %108 = vrot.lane.b32.xlu0 %v101, 96
    %v109 = vpop.permute.xlu0 %108
    %vm110 = vcmask 64512
    %v111 = vsel %vm110, %v101, 0
    %v113 = vsel %vm110, %v109, 0
    %115 = vmatprep.subr.mxu0 0.0
    %116 = vmatpush1.xpose.msra.mxu0 0.0
    %117 = vmatprep.subr.mxu0 0.0
    %118 = vmatpush1.xpose.msra.mxu0 0.0
    %119 = vmatprep.subr.mxu0 0.0
    %120 = vmatpush1.xpose.msra.mxu0 0.0
    %121 = vmatprep.subr.mxu0 0.0
    %122 = vmatpush1.xpose.msra.mxu0 0.0
    %123 = vmatprep.subr.mxu0 0.0
    %124 = vmatpush1.xpose.msra.mxu0 0.0
    %125 = vmatprep.subr.mxu0 0.0
    %126 = vmatpush1.xpose.msra.mxu0 0.0
    %127 = vmatprep.subr.mxu0 0.0
    %128 = vmatpush1.xpose.msra.mxu0 0.0
    %129 = vmatprep.subr.mxu0 0.0
    %130 = vmatpush1.xpose.msra.mxu0 0.0
    %131 = vmatprep.subr.mxu0 0.0
    %132 = vmatpush1.xpose.msra.mxu0 0.0
    %133 = vmatprep.subr.mxu0 0.0
    %134 = vmatpush1.xpose.msra.mxu0 0.0
    %135 = vmatprep.subr.mxu0 0.0
    %136 = vmatpush1.xpose.msra.mxu0 0.0
    %137 = vmatprep.subr.mxu0 0.0
    %138 = vmatpush1.xpose.msra.mxu0 0.0
    %139 = vmatprep.subr.mxu0 0.0
    %140 = vmatpush1.xpose.msra.mxu0 0.0
    %141 = vmatprep.subr.mxu0 0.0
    %142 = vmatpush1.xpose.msra.mxu0 0.0
    %143 = vmatprep.subr.mxu0 0.0
    %144 = vmatpush1.xpose.msra.mxu0 0.0
    %145 = vmatprep.subr.mxu0 0.0
    %146 = vmatpush1.xpose.msra.mxu0 %v113
    %147 = vmatprep.subr.mxu0 0.0
    %148 = vmatpush2.xpose.msra.mxu0 0.0
    %149 = vmatprep.subr.mxu0 0.0
    %150 = vmatpush2.xpose.msra.mxu0 0.0
    %151 = vmatprep.subr.mxu0 0.0
    %152 = vmatpush2.xpose.msra.mxu0 0.0
    %153 = vmatprep.subr.mxu0 0.0
    %154 = vmatpush2.xpose.msra.mxu0 0.0
    %155 = vmatprep.subr.mxu0 0.0
    %156 = vmatpush2.xpose.msra.mxu0 0.0
    %157 = vmatprep.subr.mxu0 0.0
    %158 = vmatpush2.xpose.msra.mxu0 0.0
    %159 = vmatprep.subr.mxu0 0.0
    %160 = vmatpush2.xpose.msra.mxu0 0.0
    %161 = vmatprep.subr.mxu0 0.0
    %162 = vmatpush2.xpose.msra.mxu0 0.0
    %163 = vmatprep.subr.mxu0 0.0
    %164 = vmatpush2.xpose.msra.mxu0 0.0
    %165 = vmatprep.subr.mxu0 0.0
    %166 = vmatpush2.xpose.msra.mxu0 0.0
    %167 = vmatprep.subr.mxu0 0.0
    %168 = vmatpush2.xpose.msra.mxu0 0.0
    %169 = vmatprep.subr.mxu0 0.0
    %170 = vmatpush2.xpose.msra.mxu0 0.0
    %171 = vmatprep.subr.mxu0 0.0
    %172 = vmatpush2.xpose.msra.mxu0 0.0
    %173 = vmatprep.subr.mxu0 0.0
    %174 = vmatpush2.xpose.msra.mxu0 0.0
    %175 = vmatprep.subr.mxu0 0.0
    %176 = vmatpush2.xpose.msra.mxu0 0.0
    %177 = vmatprep.subr.mxu0 0.0
    %178 = vmatpush2.xpose.msra.mxu0 0.0
    %179 = vmatprep.mubr.f32.mxu0 0.0
    %180 = vmatmul.mubr.f32.gmra.mxu0 %v111
    %v181 = vpop.f32.mrf.mxu0
    %v182 = vadd.f32 0.0, %v181
    %v183 = vpop.f32.mrf.mxu0
    %184 = vdwg.mxu0
    %186 = vrot.lane.b32.xlu0 %v104, 96
    %v187 = vpop.permute.xlu0 %186
    %v188 = vsel %vm110, %v104, 0
    %v190 = vsel %vm110, %v187, 0
    %192 = vmatprep.subr.mxu0 0.0
    %193 = vmatpush1.xpose.msra.mxu0 0.0
    %194 = vmatprep.subr.mxu0 0.0
    %195 = vmatpush1.xpose.msra.mxu0 0.0
    %196 = vmatprep.subr.mxu0 0.0
    %197 = vmatpush1.xpose.msra.mxu0 0.0
    %198 = vmatprep.subr.mxu0 0.0
    %199 = vmatpush1.xpose.msra.mxu0 0.0
    %200 = vmatprep.subr.mxu0 0.0
    %201 = vmatpush1.xpose.msra.mxu0 0.0
    %202 = vmatprep.subr.mxu0 0.0
    %203 = vmatpush1.xpose.msra.mxu0 0.0
    %204 = vmatprep.subr.mxu0 0.0
    %205 = vmatpush1.xpose.msra.mxu0 0.0
    %206 = vmatprep.subr.mxu0 0.0
    %207 = vmatpush1.xpose.msra.mxu0 0.0
    %208 = vmatprep.subr.mxu0 0.0
    %209 = vmatpush1.xpose.msra.mxu0 0.0
    %210 = vmatprep.subr.mxu0 0.0
    %211 = vmatpush1.xpose.msra.mxu0 0.0
    %212 = vmatprep.subr.mxu0 0.0
    %213 = vmatpush1.xpose.msra.mxu0 0.0
    %214 = vmatprep.subr.mxu0 0.0
    %215 = vmatpush1.xpose.msra.mxu0 0.0
    %216 = vmatprep.subr.mxu0 0.0
    %217 = vmatpush1.xpose.msra.mxu0 0.0
    %218 = vmatprep.subr.mxu0 0.0
    %219 = vmatpush1.xpose.msra.mxu0 0.0
    %220 = vmatprep.subr.mxu0 0.0
    %221 = vmatpush1.xpose.msra.mxu0 0.0
    %222 = vmatprep.subr.mxu0 0.0
    %223 = vmatpush1.xpose.msra.mxu0 %v190
    %224 = vmatprep.subr.mxu0 0.0
    %225 = vmatpush2.xpose.msra.mxu0 0.0
    %226 = vmatprep.subr.mxu0 0.0
    %227 = vmatpush2.xpose.msra.mxu0 0.0
    %228 = vmatprep.subr.mxu0 0.0
    %229 = vmatpush2.xpose.msra.mxu0 0.0
    %230 = vmatprep.subr.mxu0 0.0
    %231 = vmatpush2.xpose.msra.mxu0 0.0
    %232 = vmatprep.subr.mxu0 0.0
    %233 = vmatpush2.xpose.msra.mxu0 0.0
    %234 = vmatprep.subr.mxu0 0.0
    %235 = vmatpush2.xpose.msra.mxu0 0.0
    %236 = vmatprep.subr.mxu0 0.0
    %237 = vmatpush2.xpose.msra.mxu0 0.0
    %238 = vmatprep.subr.mxu0 0.0
    %239 = vmatpush2.xpose.msra.mxu0 0.0
    %240 = vmatprep.subr.mxu0 0.0
    %241 = vmatpush2.xpose.msra.mxu0 0.0
    %242 = vmatprep.subr.mxu0 0.0
    %243 = vmatpush2.xpose.msra.mxu0 0.0
    %244 = vmatprep.subr.mxu0 0.0
    %245 = vmatpush2.xpose.msra.mxu0 0.0
    %246 = vmatprep.subr.mxu0 0.0
    %247 = vmatpush2.xpose.msra.mxu0 0.0
    %248 = vmatprep.subr.mxu0 0.0
    %249 = vmatpush2.xpose.msra.mxu0 0.0
    %250 = vmatprep.subr.mxu0 0.0
    %251 = vmatpush2.xpose.msra.mxu0 0.0
    %252 = vmatprep.subr.mxu0 0.0
    %253 = vmatpush2.xpose.msra.mxu0 0.0
    %254 = vmatprep.subr.mxu0 0.0
    %255 = vmatpush2.xpose.msra.mxu0 0.0
    %256 = vmatprep.mubr.f32.mxu0 0.0
    %257 = vmatmul.mubr.f32.gmra.mxu0 %v188
    %v258 = vpop.f32.mrf.mxu0
    %v259 = vadd.f32 0.0, %v258
    %v260 = vpop.f32.mrf.mxu0
    %261 = vdwg.mxu0
    %v262 = vsel %vm110, %v182, -inf
    %263 = vmax.xlane.f32.xlu0 %v262
    %v264 = vpop.xlane.xlu0 %263
    %v265 = vsel %vm110, %v259, -inf
    %266 = vmax.xlane.f32.xlu0 %v265
    %v267 = vpop.xlane.xlu0 %266
    %v268 = vsub.f32 %v182, %v264
    %v269 = vsub.f32 %v259, %v267
    %v270 = vmul.f32 %v268, 1.442695
    %v271 = vpow.pop %v270
    %v272 = vmul.f32 %v269, 1.442695
    %v273 = vpow.pop %v272
    %v274 = vsel %vm110, %v271, 0.0
    %275 = vadd.xlane.f32.xlu0 %v274
    %v276 = vpop.xlane.xlu0 %275
    %v277 = vsel %vm110, %v273, 0.0
    %278 = vadd.xlane.f32.xlu0 %v277
    %v279 = vpop.xlane.xlu0 %278
    %v280 = vrcp.pop %v276
    %v281 = vrcp.pop %v279
    %v282 = vmul.f32 %v271, %v280
    %v283 = vmul.f32 %v273, %v281
    %284 = vrot.lane.b32.xlu0 %v101, 64
    %v285 = vpop.permute.xlu0 %284
    %v288 = vsel %vm110, %v282, 0
    %290 = vmatprep.subr.mxu0 0.0
    %291 = vmatpush1.msra.mxu0 0.0
    %292 = vmatprep.subr.mxu0 0.0
    %293 = vmatpush1.msra.mxu0 0.0
    %294 = vmatprep.subr.mxu0 0.0
    %295 = vmatpush1.msra.mxu0 0.0
    %296 = vmatprep.subr.mxu0 0.0
    %297 = vmatpush1.msra.mxu0 0.0
    %298 = vmatprep.subr.mxu0 0.0
    %299 = vmatpush1.msra.mxu0 0.0
    %300 = vmatprep.subr.mxu0 0.0
    %301 = vmatpush1.msra.mxu0 0.0
    %302 = vmatprep.subr.mxu0 0.0
    %303 = vmatpush1.msra.mxu0 0.0
    %304 = vmatprep.subr.mxu0 0.0
    %305 = vmatpush1.msra.mxu0 0.0
    %306 = vmatprep.subr.mxu0 0.0
    %307 = vmatpush1.msra.mxu0 0.0
    %308 = vmatprep.subr.mxu0 0.0
    %309 = vmatpush1.msra.mxu0 0.0
    %310 = vmatprep.subr.mxu0 0.0
    %311 = vmatpush1.msra.mxu0 0.0
    %312 = vmatprep.subr.mxu0 0.0
    %313 = vmatpush1.msra.mxu0 0.0
    %314 = vmatprep.subr.mxu0 0.0
    %315 = vmatpush1.msra.mxu0 0.0
    %316 = vmatprep.subr.mxu0 0.0
    %317 = vmatpush1.msra.mxu0 0.0
    %318 = vmatprep.subr.mxu0 0.0
    %319 = vmatpush1.msra.mxu0 0.0
    %320 = vmatprep.subr.mxu0 0.0
    %321 = vmatpush1.msra.mxu0 %v285
    %322 = vmatprep.subr.mxu0 0.0
    %323 = vmatpush2.msra.mxu0 0.0
    %324 = vmatprep.subr.mxu0 0.0
    %325 = vmatpush2.msra.mxu0 0.0
    %326 = vmatprep.subr.mxu0 0.0
    %327 = vmatpush2.msra.mxu0 0.0
    %328 = vmatprep.subr.mxu0 0.0
    %329 = vmatpush2.msra.mxu0 0.0
    %330 = vmatprep.subr.mxu0 0.0
    %331 = vmatpush2.msra.mxu0 0.0
    %332 = vmatprep.subr.mxu0 0.0
    %333 = vmatpush2.msra.mxu0 0.0
    %334 = vmatprep.subr.mxu0 0.0
    %335 = vmatpush2.msra.mxu0 0.0
    %336 = vmatprep.subr.mxu0 0.0
    %337 = vmatpush2.msra.mxu0 0.0
    %338 = vmatprep.subr.mxu0 0.0
    %339 = vmatpush2.msra.mxu0 0.0
    %340 = vmatprep.subr.mxu0 0.0
    %341 = vmatpush2.msra.mxu0 0.0
    %342 = vmatprep.subr.mxu0 0.0
    %343 = vmatpush2.msra.mxu0 0.0
    %344 = vmatprep.subr.mxu0 0.0
    %345 = vmatpush2.msra.mxu0 0.0
    %346 = vmatprep.subr.mxu0 0.0
    %347 = vmatpush2.msra.mxu0 0.0
    %348 = vmatprep.subr.mxu0 0.0
    %349 = vmatpush2.msra.mxu0 0.0
    %350 = vmatprep.subr.mxu0 0.0
    %351 = vmatpush2.msra.mxu0 0.0
    %352 = vmatprep.subr.mxu0 0.0
    %353 = vmatpush2.msra.mxu0 0.0
    %354 = vmatprep.mubr.f32.mxu0 0.0
    %355 = vmatmul.mubr.f32.gmra.mxu0 %v288
    %v356 = vpop.f32.mrf.mxu0
    %v357 = vadd.f32 0.0, %v356
    %v358 = vpop.f32.mrf.mxu0
    %359 = vdwg.mxu0
    %360 = vrot.lane.b32.xlu0 %v104, 64
    %v361 = vpop.permute.xlu0 %360
    %v364 = vsel %vm110, %v283, 0
    %366 = vmatprep.subr.mxu0 0.0
    %367 = vmatpush1.msra.mxu0 0.0
    %368 = vmatprep.subr.mxu0 0.0
    %369 = vmatpush1.msra.mxu0 0.0
    %370 = vmatprep.subr.mxu0 0.0
    %371 = vmatpush1.msra.mxu0 0.0
    %372 = vmatprep.subr.mxu0 0.0
    %373 = vmatpush1.msra.mxu0 0.0
    %374 = vmatprep.subr.mxu0 0.0
    %375 = vmatpush1.msra.mxu0 0.0
    %376 = vmatprep.subr.mxu0 0.0
    %377 = vmatpush1.msra.mxu0 0.0
    %378 = vmatprep.subr.mxu0 0.0
    %379 = vmatpush1.msra.mxu0 0.0
    %380 = vmatprep.subr.mxu0 0.0
    %381 = vmatpush1.msra.mxu0 0.0
    %382 = vmatprep.subr.mxu0 0.0
    %383 = vmatpush1.msra.mxu0 0.0
    %384 = vmatprep.subr.mxu0 0.0
    %385 = vmatpush1.msra.mxu0 0.0
    %386 = vmatprep.subr.mxu0 0.0
    %387 = vmatpush1.msra.mxu0 0.0
    %388 = vmatprep.subr.mxu0 0.0
    %389 = vmatpush1.msra.mxu0 0.0
    %390 = vmatprep.subr.mxu0 0.0
    %391 = vmatpush1.msra.mxu0 0.0
    %392 = vmatprep.subr.mxu0 0.0
    %393 = vmatpush1.msra.mxu0 0.0
    %394 = vmatprep.subr.mxu0 0.0
    %395 = vmatpush1.msra.mxu0 0.0
    %396 = vmatprep.subr.mxu0 0.0
    %397 = vmatpush1.msra.mxu0 %v361
    %398 = vmatprep.subr.mxu0 0.0
    %399 = vmatpush2.msra.mxu0 0.0
    %400 = vmatprep.subr.mxu0 0.0
    %401 = vmatpush2.msra.mxu0 0.0
    %402 = vmatprep.subr.mxu0 0.0
    %403 = vmatpush2.msra.mxu0 0.0
    %404 = vmatprep.subr.mxu0 0.0
    %405 = vmatpush2.msra.mxu0 0.0
    %406 = vmatprep.subr.mxu0 0.0
    %407 = vmatpush2.msra.mxu0 0.0
    %408 = vmatprep.subr.mxu0 0.0
    %409 = vmatpush2.msra.mxu0 0.0
    %410 = vmatprep.subr.mxu0 0.0
    %411 = vmatpush2.msra.mxu0 0.0
    %412 = vmatprep.subr.mxu0 0.0
    %413 = vmatpush2.msra.mxu0 0.0
    %414 = vmatprep.subr.mxu0 0.0
    %415 = vmatpush2.msra.mxu0 0.0
    %416 = vmatprep.subr.mxu0 0.0
    %417 = vmatpush2.msra.mxu0 0.0
    %418 = vmatprep.subr.mxu0 0.0
    %419 = vmatpush2.msra.mxu0 0.0
    %420 = vmatprep.subr.mxu0 0.0
    %421 = vmatpush2.msra.mxu0 0.0
    %422 = vmatprep.subr.mxu0 0.0
    %423 = vmatpush2.msra.mxu0 0.0
    %424 = vmatprep.subr.mxu0 0.0
    %425 = vmatpush2.msra.mxu0 0.0
    %426 = vmatprep.subr.mxu0 0.0
    %427 = vmatpush2.msra.mxu0 0.0
    %428 = vmatprep.subr.mxu0 0.0
    %429 = vmatpush2.msra.mxu0 0.0
    %430 = vmatprep.mubr.f32.mxu0 0.0
    %431 = vmatmul.mubr.f32.gmra.mxu0 %v364
    %v432 = vpop.f32.mrf.mxu0
    %v433 = vadd.f32 0.0, %v432
    %v434 = vpop.f32.mrf.mxu0
    %435 = vdwg.mxu0
    %436 = vrot.lane.b32.xlu0 %v101, 120
    %v437 = vpop.permute.xlu0 %436
    %438 = vrot.lane.b32.xlu0 %v101, 88
    %v439 = vpop.permute.xlu0 %438
    %v440 = vsel %vm110, %v437, 0
    %v442 = vsel %vm110, %v439, 0
    %444 = vmatprep.subr.mxu0 0.0
    %445 = vmatpush1.xpose.msra.mxu0 0.0
    %446 = vmatprep.subr.mxu0 0.0
    %447 = vmatpush1.xpose.msra.mxu0 0.0
    %448 = vmatprep.subr.mxu0 0.0
    %449 = vmatpush1.xpose.msra.mxu0 0.0
    %450 = vmatprep.subr.mxu0 0.0
    %451 = vmatpush1.xpose.msra.mxu0 0.0
    %452 = vmatprep.subr.mxu0 0.0
    %453 = vmatpush1.xpose.msra.mxu0 0.0
    %454 = vmatprep.subr.mxu0 0.0
    %455 = vmatpush1.xpose.msra.mxu0 0.0
    %456 = vmatprep.subr.mxu0 0.0
    %457 = vmatpush1.xpose.msra.mxu0 0.0
    %458 = vmatprep.subr.mxu0 0.0
    %459 = vmatpush1.xpose.msra.mxu0 0.0
    %460 = vmatprep.subr.mxu0 0.0
    %461 = vmatpush1.xpose.msra.mxu0 0.0
    %462 = vmatprep.subr.mxu0 0.0
    %463 = vmatpush1.xpose.msra.mxu0 0.0
    %464 = vmatprep.subr.mxu0 0.0
    %465 = vmatpush1.xpose.msra.mxu0 0.0
    %466 = vmatprep.subr.mxu0 0.0
    %467 = vmatpush1.xpose.msra.mxu0 0.0
    %468 = vmatprep.subr.mxu0 0.0
    %469 = vmatpush1.xpose.msra.mxu0 0.0
    %470 = vmatprep.subr.mxu0 0.0
    %471 = vmatpush1.xpose.msra.mxu0 0.0
    %472 = vmatprep.subr.mxu0 0.0
    %473 = vmatpush1.xpose.msra.mxu0 0.0
    %474 = vmatprep.subr.mxu0 0.0
    %475 = vmatpush1.xpose.msra.mxu0 %v442
    %476 = vmatprep.subr.mxu0 0.0
    %477 = vmatpush2.xpose.msra.mxu0 0.0
    %478 = vmatprep.subr.mxu0 0.0
    %479 = vmatpush2.xpose.msra.mxu0 0.0
    %480 = vmatprep.subr.mxu0 0.0
    %481 = vmatpush2.xpose.msra.mxu0 0.0
    %482 = vmatprep.subr.mxu0 0.0
    %483 = vmatpush2.xpose.msra.mxu0 0.0
    %484 = vmatprep.subr.mxu0 0.0
    %485 = vmatpush2.xpose.msra.mxu0 0.0
    %486 = vmatprep.subr.mxu0 0.0
    %487 = vmatpush2.xpose.msra.mxu0 0.0
    %488 = vmatprep.subr.mxu0 0.0
    %489 = vmatpush2.xpose.msra.mxu0 0.0
    %490 = vmatprep.subr.mxu0 0.0
    %491 = vmatpush2.xpose.msra.mxu0 0.0
    %492 = vmatprep.subr.mxu0 0.0
    %493 = vmatpush2.xpose.msra.mxu0 0.0
    %494 = vmatprep.subr.mxu0 0.0
    %495 = vmatpush2.xpose.msra.mxu0 0.0
    %496 = vmatprep.subr.mxu0 0.0
    %497 = vmatpush2.xpose.msra.mxu0 0.0
    %498 = vmatprep.subr.mxu0 0.0
    %499 = vmatpush2.xpose.msra.mxu0 0.0
    %500 = vmatprep.subr.mxu0 0.0
    %501 = vmatpush2.xpose.msra.mxu0 0.0
    %502 = vmatprep.subr.mxu0 0.0
    %503 = vmatpush2.xpose.msra.mxu0 0.0
    %504 = vmatprep.subr.mxu0 0.0
    %505 = vmatpush2.xpose.msra.mxu0 0.0
    %506 = vmatprep.subr.mxu0 0.0
    %507 = vmatpush2.xpose.msra.mxu0 0.0
    %508 = vmatprep.mubr.f32.mxu0 0.0
    %509 = vmatmul.mubr.f32.gmra.mxu0 %v440
    %v510 = vpop.f32.mrf.mxu0
    %v511 = vadd.f32 0.0, %v510
    %v512 = vpop.f32.mrf.mxu0
    %513 = vdwg.mxu0
    %514 = vrot.lane.b32.xlu0 %v104, 120
    %v515 = vpop.permute.xlu0 %514
    %516 = vrot.lane.b32.xlu0 %v104, 88
    %v517 = vpop.permute.xlu0 %516
    %v518 = vsel %vm110, %v515, 0
    %v520 = vsel %vm110, %v517, 0
    %522 = vmatprep.subr.mxu0 0.0
    %523 = vmatpush1.xpose.msra.mxu0 0.0
    %524 = vmatprep.subr.mxu0 0.0
    %525 = vmatpush1.xpose.msra.mxu0 0.0
    %526 = vmatprep.subr.mxu0 0.0
    %527 = vmatpush1.xpose.msra.mxu0 0.0
    %528 = vmatprep.subr.mxu0 0.0
    %529 = vmatpush1.xpose.msra.mxu0 0.0
    %530 = vmatprep.subr.mxu0 0.0
    %531 = vmatpush1.xpose.msra.mxu0 0.0
    %532 = vmatprep.subr.mxu0 0.0
    %533 = vmatpush1.xpose.msra.mxu0 0.0
    %534 = vmatprep.subr.mxu0 0.0
    %535 = vmatpush1.xpose.msra.mxu0 0.0
    %536 = vmatprep.subr.mxu0 0.0
    %537 = vmatpush1.xpose.msra.mxu0 0.0
    %538 = vmatprep.subr.mxu0 0.0
    %539 = vmatpush1.xpose.msra.mxu0 0.0
    %540 = vmatprep.subr.mxu0 0.0
    %541 = vmatpush1.xpose.msra.mxu0 0.0
    %542 = vmatprep.subr.mxu0 0.0
    %543 = vmatpush1.xpose.msra.mxu0 0.0
    %544 = vmatprep.subr.mxu0 0.0
    %545 = vmatpush1.xpose.msra.mxu0 0.0
    %546 = vmatprep.subr.mxu0 0.0
    %547 = vmatpush1.xpose.msra.mxu0 0.0
    %548 = vmatprep.subr.mxu0 0.0
    %549 = vmatpush1.xpose.msra.mxu0 0.0
    %550 = vmatprep.subr.mxu0 0.0
    %551 = vmatpush1.xpose.msra.mxu0 0.0
    %552 = vmatprep.subr.mxu0 0.0
    %553 = vmatpush1.xpose.msra.mxu0 %v520
    %554 = vmatprep.subr.mxu0 0.0
    %555 = vmatpush2.xpose.msra.mxu0 0.0
    %556 = vmatprep.subr.mxu0 0.0
    %557 = vmatpush2.xpose.msra.mxu0 0.0
    %558 = vmatprep.subr.mxu0 0.0
    %559 = vmatpush2.xpose.msra.mxu0 0.0
    %560 = vmatprep.subr.mxu0 0.0
    %561 = vmatpush2.xpose.msra.mxu0 0.0
    %562 = vmatprep.subr.mxu0 0.0
    %563 = vmatpush2.xpose.msra.mxu0 0.0
    %564 = vmatprep.subr.mxu0 0.0
    %565 = vmatpush2.xpose.msra.mxu0 0.0
    %566 = vmatprep.subr.mxu0 0.0
    %567 = vmatpush2.xpose.msra.mxu0 0.0
    %568 = vmatprep.subr.mxu0 0.0
    %569 = vmatpush2.xpose.msra.mxu0 0.0
    %570 = vmatprep.subr.mxu0 0.0
    %571 = vmatpush2.xpose.msra.mxu0 0.0
    %572 = vmatprep.subr.mxu0 0.0
    %573 = vmatpush2.xpose.msra.mxu0 0.0
    %574 = vmatprep.subr.mxu0 0.0
    %575 = vmatpush2.xpose.msra.mxu0 0.0
    %576 = vmatprep.subr.mxu0 0.0
    %577 = vmatpush2.xpose.msra.mxu0 0.0
    %578 = vmatprep.subr.mxu0 0.0
    %579 = vmatpush2.xpose.msra.mxu0 0.0
    %580 = vmatprep.subr.mxu0 0.0
    %581 = vmatpush2.xpose.msra.mxu0 0.0
    %582 = vmatprep.subr.mxu0 0.0
    %583 = vmatpush2.xpose.msra.mxu0 0.0
    %584 = vmatprep.subr.mxu0 0.0
    %585 = vmatpush2.xpose.msra.mxu0 0.0
    %586 = vmatprep.mubr.f32.mxu0 0.0
    %587 = vmatmul.mubr.f32.gmra.mxu0 %v518
    %v588 = vpop.f32.mrf.mxu0
    %v589 = vadd.f32 0.0, %v588
    %v590 = vpop.f32.mrf.mxu0
    %591 = vdwg.mxu0
    %v592 = vsel %vm110, %v511, -inf
    %593 = vmax.xlane.f32.xlu0 %v592
    %v594 = vpop.xlane.xlu0 %593
    %v595 = vsel %vm110, %v589, -inf
    %596 = vmax.xlane.f32.xlu0 %v595
    %v597 = vpop.xlane.xlu0 %596
    %v598 = vsub.f32 %v511, %v594
    %v599 = vsub.f32 %v589, %v597
    %v600 = vmul.f32 %v598, 1.442695
    %v601 = vpow.pop %v600
    %v602 = vmul.f32 %v599, 1.442695
    %v603 = vpow.pop %v602
    %v604 = vsel %vm110, %v601, 0.0
    %605 = vadd.xlane.f32.xlu0 %v604
    %v606 = vpop.xlane.xlu0 %605
    %v607 = vsel %vm110, %v603, 0.0
    %608 = vadd.xlane.f32.xlu0 %v607
    %v609 = vpop.xlane.xlu0 %608
    %v610 = vrcp.pop %v606
    %v611 = vrcp.pop %v609
    %v612 = vmul.f32 %v601, %v610
    %v613 = vmul.f32 %v603, %v611
    %614 = vrot.lane.b32.xlu0 %v101, 56
    %v615 = vpop.permute.xlu0 %614
    %v618 = vsel %vm110, %v612, 0
    %620 = vmatprep.subr.mxu0 0.0
    %621 = vmatpush1.msra.mxu0 0.0
    %622 = vmatprep.subr.mxu0 0.0
    %623 = vmatpush1.msra.mxu0 0.0
    %624 = vmatprep.subr.mxu0 0.0
    %625 = vmatpush1.msra.mxu0 0.0
    %626 = vmatprep.subr.mxu0 0.0
    %627 = vmatpush1.msra.mxu0 0.0
    %628 = vmatprep.subr.mxu0 0.0
    %629 = vmatpush1.msra.mxu0 0.0
    %630 = vmatprep.subr.mxu0 0.0
    %631 = vmatpush1.msra.mxu0 0.0
    %632 = vmatprep.subr.mxu0 0.0
    %633 = vmatpush1.msra.mxu0 0.0
    %634 = vmatprep.subr.mxu0 0.0
    %635 = vmatpush1.msra.mxu0 0.0
    %636 = vmatprep.subr.mxu0 0.0
    %637 = vmatpush1.msra.mxu0 0.0
    %638 = vmatprep.subr.mxu0 0.0
    %639 = vmatpush1.msra.mxu0 0.0
    %640 = vmatprep.subr.mxu0 0.0
    %641 = vmatpush1.msra.mxu0 0.0
    %642 = vmatprep.subr.mxu0 0.0
    %643 = vmatpush1.msra.mxu0 0.0
    %644 = vmatprep.subr.mxu0 0.0
    %645 = vmatpush1.msra.mxu0 0.0
    %646 = vmatprep.subr.mxu0 0.0
    %647 = vmatpush1.msra.mxu0 0.0
    %648 = vmatprep.subr.mxu0 0.0
    %649 = vmatpush1.msra.mxu0 0.0
    %650 = vmatprep.subr.mxu0 0.0
    %651 = vmatpush1.msra.mxu0 %v615
    %652 = vmatprep.subr.mxu0 0.0
    %653 = vmatpush2.msra.mxu0 0.0
    %654 = vmatprep.subr.mxu0 0.0
    %655 = vmatpush2.msra.mxu0 0.0
    %656 = vmatprep.subr.mxu0 0.0
    %657 = vmatpush2.msra.mxu0 0.0
    %658 = vmatprep.subr.mxu0 0.0
    %659 = vmatpush2.msra.mxu0 0.0
    %660 = vmatprep.subr.mxu0 0.0
    %661 = vmatpush2.msra.mxu0 0.0
    %662 = vmatprep.subr.mxu0 0.0
    %663 = vmatpush2.msra.mxu0 0.0
    %664 = vmatprep.subr.mxu0 0.0
    %665 = vmatpush2.msra.mxu0 0.0
    %666 = vmatprep.subr.mxu0 0.0
    %667 = vmatpush2.msra.mxu0 0.0
    %668 = vmatprep.subr.mxu0 0.0
    %669 = vmatpush2.msra.mxu0 0.0
    %670 = vmatprep.subr.mxu0 0.0
    %671 = vmatpush2.msra.mxu0 0.0
    %672 = vmatprep.subr.mxu0 0.0
    %673 = vmatpush2.msra.mxu0 0.0
    %674 = vmatprep.subr.mxu0 0.0
    %675 = vmatpush2.msra.mxu0 0.0
    %676 = vmatprep.subr.mxu0 0.0
    %677 = vmatpush2.msra.mxu0 0.0
    %678 = vmatprep.subr.mxu0 0.0
    %679 = vmatpush2.msra.mxu0 0.0
    %680 = vmatprep.subr.mxu0 0.0
    %681 = vmatpush2.msra.mxu0 0.0
    %682 = vmatprep.subr.mxu0 0.0
    %683 = vmatpush2.msra.mxu0 0.0
    %684 = vmatprep.mubr.f32.mxu0 0.0
    %685 = vmatmul.mubr.f32.gmra.mxu0 %v618
    %v686 = vpop.f32.mrf.mxu0
    %v687 = vadd.f32 0.0, %v686
    %v688 = vpop.f32.mrf.mxu0
    %689 = vdwg.mxu0
    %690 = vrot.lane.b32.xlu0 %v104, 56
    %v691 = vpop.permute.xlu0 %690
    %v694 = vsel %vm110, %v613, 0
    %696 = vmatprep.subr.mxu0 0.0
    %697 = vmatpush1.msra.mxu0 0.0
    %698 = vmatprep.subr.mxu0 0.0
    %699 = vmatpush1.msra.mxu0 0.0
    %700 = vmatprep.subr.mxu0 0.0
    %701 = vmatpush1.msra.mxu0 0.0
    %702 = vmatprep.subr.mxu0 0.0
    %703 = vmatpush1.msra.mxu0 0.0
    %704 = vmatprep.subr.mxu0 0.0
    %705 = vmatpush1.msra.mxu0 0.0
    %706 = vmatprep.subr.mxu0 0.0
    %707 = vmatpush1.msra.mxu0 0.0
    %708 = vmatprep.subr.mxu0 0.0
    %709 = vmatpush1.msra.mxu0 0.0
    %710 = vmatprep.subr.mxu0 0.0
    %711 = vmatpush1.msra.mxu0 0.0
    %712 = vmatprep.subr.mxu0 0.0
    %713 = vmatpush1.msra.mxu0 0.0
    %714 = vmatprep.subr.mxu0 0.0
    %715 = vmatpush1.msra.mxu0 0.0
    %716 = vmatprep.subr.mxu0 0.0
    %717 = vmatpush1.msra.mxu0 0.0
    %718 = vmatprep.subr.mxu0 0.0
    %719 = vmatpush1.msra.mxu0 0.0
    %720 = vmatprep.subr.mxu0 0.0
    %721 = vmatpush1.msra.mxu0 0.0
    %722 = vmatprep.subr.mxu0 0.0
    %723 = vmatpush1.msra.mxu0 0.0
    %724 = vmatprep.subr.mxu0 0.0
    %725 = vmatpush1.msra.mxu0 0.0
    %726 = vmatprep.subr.mxu0 0.0
    %727 = vmatpush1.msra.mxu0 %v691
    %728 = vmatprep.subr.mxu0 0.0
    %729 = vmatpush2.msra.mxu0 0.0
    %730 = vmatprep.subr.mxu0 0.0
    %731 = vmatpush2.msra.mxu0 0.0
    %732 = vmatprep.subr.mxu0 0.0
    %733 = vmatpush2.msra.mxu0 0.0
    %734 = vmatprep.subr.mxu0 0.0
    %735 = vmatpush2.msra.mxu0 0.0
    %736 = vmatprep.subr.mxu0 0.0
    %737 = vmatpush2.msra.mxu0 0.0
    %738 = vmatprep.subr.mxu0 0.0
    %739 = vmatpush2.msra.mxu0 0.0
    %740 = vmatprep.subr.mxu0 0.0
    %741 = vmatpush2.msra.mxu0 0.0
    %742 = vmatprep.subr.mxu0 0.0
    %743 = vmatpush2.msra.mxu0 0.0
    %744 = vmatprep.subr.mxu0 0.0
    %745 = vmatpush2.msra.mxu0 0.0
    %746 = vmatprep.subr.mxu0 0.0
    %747 = vmatpush2.msra.mxu0 0.0
    %748 = vmatprep.subr.mxu0 0.0
    %749 = vmatpush2.msra.mxu0 0.0
    %750 = vmatprep.subr.mxu0 0.0
    %751 = vmatpush2.msra.mxu0 0.0
    %752 = vmatprep.subr.mxu0 0.0
    %753 = vmatpush2.msra.mxu0 0.0
    %754 = vmatprep.subr.mxu0 0.0
    %755 = vmatpush2.msra.mxu0 0.0
    %756 = vmatprep.subr.mxu0 0.0
    %757 = vmatpush2.msra.mxu0 0.0
    %758 = vmatprep.subr.mxu0 0.0
    %759 = vmatpush2.msra.mxu0 0.0
    %760 = vmatprep.mubr.f32.mxu0 0.0
    %761 = vmatmul.mubr.f32.gmra.mxu0 %v694
    %v762 = vpop.f32.mrf.mxu0
    %v763 = vadd.f32 0.0, %v762
    %v764 = vpop.f32.mrf.mxu0
    %765 = vdwg.mxu0
    %766 = vrot.lane.b32.xlu0 %v101, 112
    %v767 = vpop.permute.xlu0 %766
    %768 = vrot.lane.b32.xlu0 %v101, 80
    %v769 = vpop.permute.xlu0 %768
    %v770 = vsel %vm110, %v767, 0
    %v772 = vsel %vm110, %v769, 0
    %774 = vmatprep.subr.mxu0 0.0
    %775 = vmatpush1.xpose.msra.mxu0 0.0
    %776 = vmatprep.subr.mxu0 0.0
    %777 = vmatpush1.xpose.msra.mxu0 0.0
    %778 = vmatprep.subr.mxu0 0.0
    %779 = vmatpush1.xpose.msra.mxu0 0.0
    %780 = vmatprep.subr.mxu0 0.0
    %781 = vmatpush1.xpose.msra.mxu0 0.0
    %782 = vmatprep.subr.mxu0 0.0
    %783 = vmatpush1.xpose.msra.mxu0 0.0
    %784 = vmatprep.subr.mxu0 0.0
    %785 = vmatpush1.xpose.msra.mxu0 0.0
    %786 = vmatprep.subr.mxu0 0.0
    %787 = vmatpush1.xpose.msra.mxu0 0.0
    %788 = vmatprep.subr.mxu0 0.0
    %789 = vmatpush1.xpose.msra.mxu0 0.0
    %790 = vmatprep.subr.mxu0 0.0
    %791 = vmatpush1.xpose.msra.mxu0 0.0
    %792 = vmatprep.subr.mxu0 0.0
    %793 = vmatpush1.xpose.msra.mxu0 0.0
    %794 = vmatprep.subr.mxu0 0.0
    %795 = vmatpush1.xpose.msra.mxu0 0.0
    %796 = vmatprep.subr.mxu0 0.0
    %797 = vmatpush1.xpose.msra.mxu0 0.0
    %798 = vmatprep.subr.mxu0 0.0
    %799 = vmatpush1.xpose.msra.mxu0 0.0
    %800 = vmatprep.subr.mxu0 0.0
    %801 = vmatpush1.xpose.msra.mxu0 0.0
    %802 = vmatprep.subr.mxu0 0.0
    %803 = vmatpush1.xpose.msra.mxu0 0.0
    %804 = vmatprep.subr.mxu0 0.0
    %805 = vmatpush1.xpose.msra.mxu0 %v772
    %806 = vmatprep.subr.mxu0 0.0
    %807 = vmatpush2.xpose.msra.mxu0 0.0
    %808 = vmatprep.subr.mxu0 0.0
    %809 = vmatpush2.xpose.msra.mxu0 0.0
    %810 = vmatprep.subr.mxu0 0.0
    %811 = vmatpush2.xpose.msra.mxu0 0.0
    %812 = vmatprep.subr.mxu0 0.0
    %813 = vmatpush2.xpose.msra.mxu0 0.0
    %814 = vmatprep.subr.mxu0 0.0
    %815 = vmatpush2.xpose.msra.mxu0 0.0
    %816 = vmatprep.subr.mxu0 0.0
    %817 = vmatpush2.xpose.msra.mxu0 0.0
    %818 = vmatprep.subr.mxu0 0.0
    %819 = vmatpush2.xpose.msra.mxu0 0.0
    %820 = vmatprep.subr.mxu0 0.0
    %821 = vmatpush2.xpose.msra.mxu0 0.0
    %822 = vmatprep.subr.mxu0 0.0
    %823 = vmatpush2.xpose.msra.mxu0 0.0
    %824 = vmatprep.subr.mxu0 0.0
    %825 = vmatpush2.xpose.msra.mxu0 0.0
    %826 = vmatprep.subr.mxu0 0.0
    %827 = vmatpush2.xpose.msra.mxu0 0.0
    %828 = vmatprep.subr.mxu0 0.0
    %829 = vmatpush2.xpose.msra.mxu0 0.0
    %830 = vmatprep.subr.mxu0 0.0
    %831 = vmatpush2.xpose.msra.mxu0 0.0
    %832 = vmatprep.subr.mxu0 0.0
    %833 = vmatpush2.xpose.msra.mxu0 0.0
    %834 = vmatprep.subr.mxu0 0.0
    %835 = vmatpush2.xpose.msra.mxu0 0.0
    %836 = vmatprep.subr.mxu0 0.0
    %837 = vmatpush2.xpose.msra.mxu0 0.0
    %838 = vmatprep.mubr.f32.mxu0 0.0
    %839 = vmatmul.mubr.f32.gmra.mxu0 %v770
    %v840 = vpop.f32.mrf.mxu0
    %v841 = vadd.f32 0.0, %v840
    %v842 = vpop.f32.mrf.mxu0
    %843 = vdwg.mxu0
    %844 = vrot.lane.b32.xlu0 %v104, 112
    %v845 = vpop.permute.xlu0 %844
    %846 = vrot.lane.b32.xlu0 %v104, 80
    %v847 = vpop.permute.xlu0 %846
    %v848 = vsel %vm110, %v845, 0
    %v850 = vsel %vm110, %v847, 0
    %852 = vmatprep.subr.mxu0 0.0
    %853 = vmatpush1.xpose.msra.mxu0 0.0
    %854 = vmatprep.subr.mxu0 0.0
    %855 = vmatpush1.xpose.msra.mxu0 0.0
    %856 = vmatprep.subr.mxu0 0.0
    %857 = vmatpush1.xpose.msra.mxu0 0.0
    %858 = vmatprep.subr.mxu0 0.0
    %859 = vmatpush1.xpose.msra.mxu0 0.0
    %860 = vmatprep.subr.mxu0 0.0
    %861 = vmatpush1.xpose.msra.mxu0 0.0
    %862 = vmatprep.subr.mxu0 0.0
    %863 = vmatpush1.xpose.msra.mxu0 0.0
    %864 = vmatprep.subr.mxu0 0.0
    %865 = vmatpush1.xpose.msra.mxu0 0.0
    %866 = vmatprep.subr.mxu0 0.0
    %867 = vmatpush1.xpose.msra.mxu0 0.0
    %868 = vmatprep.subr.mxu0 0.0
    %869 = vmatpush1.xpose.msra.mxu0 0.0
    %870 = vmatprep.subr.mxu0 0.0
    %871 = vmatpush1.xpose.msra.mxu0 0.0
    %872 = vmatprep.subr.mxu0 0.0
    %873 = vmatpush1.xpose.msra.mxu0 0.0
    %874 = vmatprep.subr.mxu0 0.0
    %875 = vmatpush1.xpose.msra.mxu0 0.0
    %876 = vmatprep.subr.mxu0 0.0
    %877 = vmatpush1.xpose.msra.mxu0 0.0
    %878 = vmatprep.subr.mxu0 0.0
    %879 = vmatpush1.xpose.msra.mxu0 0.0
    %880 = vmatprep.subr.mxu0 0.0
    %881 = vmatpush1.xpose.msra.mxu0 0.0
    %882 = vmatprep.subr.mxu0 0.0
    %883 = vmatpush1.xpose.msra.mxu0 %v850
    %884 = vmatprep.subr.mxu0 0.0
    %885 = vmatpush2.xpose.msra.mxu0 0.0
    %886 = vmatprep.subr.mxu0 0.0
    %887 = vmatpush2.xpose.msra.mxu0 0.0
    %888 = vmatprep.subr.mxu0 0.0
    %889 = vmatpush2.xpose.msra.mxu0 0.0
    %890 = vmatprep.subr.mxu0 0.0
    %891 = vmatpush2.xpose.msra.mxu0 0.0
    %892 = vmatprep.subr.mxu0 0.0
    %893 = vmatpush2.xpose.msra.mxu0 0.0
    %894 = vmatprep.subr.mxu0 0.0
    %895 = vmatpush2.xpose.msra.mxu0 0.0
    %896 = vmatprep.subr.mxu0 0.0
    %897 = vmatpush2.xpose.msra.mxu0 0.0
    %898 = vmatprep.subr.mxu0 0.0
    %899 = vmatpush2.xpose.msra.mxu0 0.0
    %900 = vmatprep.subr.mxu0 0.0
    %901 = vmatpush2.xpose.msra.mxu0 0.0
    %902 = vmatprep.subr.mxu0 0.0
    %903 = vmatpush2.xpose.msra.mxu0 0.0
    %904 = vmatprep.subr.mxu0 0.0
    %905 = vmatpush2.xpose.msra.mxu0 0.0
    %906 = vmatprep.subr.mxu0 0.0
    %907 = vmatpush2.xpose.msra.mxu0 0.0
    %908 = vmatprep.subr.mxu0 0.0
    %909 = vmatpush2.xpose.msra.mxu0 0.0
    %910 = vmatprep.subr.mxu0 0.0
    %911 = vmatpush2.xpose.msra.mxu0 0.0
    %912 = vmatprep.subr.mxu0 0.0
    %913 = vmatpush2.xpose.msra.mxu0 0.0
    %914 = vmatprep.subr.mxu0 0.0
    %915 = vmatpush2.xpose.msra.mxu0 0.0
    %916 = vmatprep.mubr.f32.mxu0 0.0
    %917 = vmatmul.mubr.f32.gmra.mxu0 %v848
    %v918 = vpop.f32.mrf.mxu0
    %v919 = vadd.f32 0.0, %v918
    %v920 = vpop.f32.mrf.mxu0
    %921 = vdwg.mxu0
    %v922 = vsel %vm110, %v841, -inf
    %923 = vmax.xlane.f32.xlu0 %v922
    %v924 = vpop.xlane.xlu0 %923
    %v925 = vsel %vm110, %v919, -inf
    %926 = vmax.xlane.f32.xlu0 %v925
    %v927 = vpop.xlane.xlu0 %926
    %v928 = vsub.f32 %v841, %v924
    %v929 = vsub.f32 %v919, %v927
    %v930 = vmul.f32 %v928, 1.442695
    %v931 = vpow.pop %v930
    %v932 = vmul.f32 %v929, 1.442695
    %v933 = vpow.pop %v932
    %v934 = vsel %vm110, %v931, 0.0
    %935 = vadd.xlane.f32.xlu0 %v934
    %v936 = vpop.xlane.xlu0 %935
    %v937 = vsel %vm110, %v933, 0.0
    %938 = vadd.xlane.f32.xlu0 %v937
    %v939 = vpop.xlane.xlu0 %938
    %v940 = vrcp.pop %v936
    %v941 = vrcp.pop %v939
    %v942 = vmul.f32 %v931, %v940
    %v943 = vmul.f32 %v933, %v941
    %944 = vrot.lane.b32.xlu0 %v101, 48
    %v945 = vpop.permute.xlu0 %944
    %v948 = vsel %vm110, %v942, 0
    %950 = vmatprep.subr.mxu0 0.0
    %951 = vmatpush1.msra.mxu0 0.0
    %952 = vmatprep.subr.mxu0 0.0
    %953 = vmatpush1.msra.mxu0 0.0
    %954 = vmatprep.subr.mxu0 0.0
    %955 = vmatpush1.msra.mxu0 0.0
    %956 = vmatprep.subr.mxu0 0.0
    %957 = vmatpush1.msra.mxu0 0.0
    %958 = vmatprep.subr.mxu0 0.0
    %959 = vmatpush1.msra.mxu0 0.0
    %960 = vmatprep.subr.mxu0 0.0
    %961 = vmatpush1.msra.mxu0 0.0
    %962 = vmatprep.subr.mxu0 0.0
    %963 = vmatpush1.msra.mxu0 0.0
    %964 = vmatprep.subr.mxu0 0.0
    %965 = vmatpush1.msra.mxu0 0.0
    %966 = vmatprep.subr.mxu0 0.0
    %967 = vmatpush1.msra.mxu0 0.0
    %968 = vmatprep.subr.mxu0 0.0
    %969 = vmatpush1.msra.mxu0 0.0
    %970 = vmatprep.subr.mxu0 0.0
    %971 = vmatpush1.msra.mxu0 0.0
    %972 = vmatprep.subr.mxu0 0.0
    %973 = vmatpush1.msra.mxu0 0.0
    %974 = vmatprep.subr.mxu0 0.0
    %975 = vmatpush1.msra.mxu0 0.0
    %976 = vmatprep.subr.mxu0 0.0
    %977 = vmatpush1.msra.mxu0 0.0
    %978 = vmatprep.subr.mxu0 0.0
    %979 = vmatpush1.msra.mxu0 0.0
    %980 = vmatprep.subr.mxu0 0.0
    %981 = vmatpush1.msra.mxu0 %v945
    %982 = vmatprep.subr.mxu0 0.0
    %983 = vmatpush2.msra.mxu0 0.0
    %984 = vmatprep.subr.mxu0 0.0
    %985 = vmatpush2.msra.mxu0 0.0
    %986 = vmatprep.subr.mxu0 0.0
    %987 = vmatpush2.msra.mxu0 0.0
    %988 = vmatprep.subr.mxu0 0.0
    %989 = vmatpush2.msra.mxu0 0.0
    %990 = vmatprep.subr.mxu0 0.0
    %991 = vmatpush2.msra.mxu0 0.0
    %992 = vmatprep.subr.mxu0 0.0
    %993 = vmatpush2.msra.mxu0 0.0
    %994 = vmatprep.subr.mxu0 0.0
    %995 = vmatpush2.msra.mxu0 0.0
    %996 = vmatprep.subr.mxu0 0.0
    %997 = vmatpush2.msra.mxu0 0.0
    %998 = vmatprep.subr.mxu0 0.0
    %999 = vmatpush2.msra.mxu0 0.0
    %1000 = vmatprep.subr.mxu0 0.0
    %1001 = vmatpush2.msra.mxu0 0.0
    %1002 = vmatprep.subr.mxu0 0.0
    %1003 = vmatpush2.msra.mxu0 0.0
    %1004 = vmatprep.subr.mxu0 0.0
    %1005 = vmatpush2.msra.mxu0 0.0
    %1006 = vmatprep.subr.mxu0 0.0
    %1007 = vmatpush2.msra.mxu0 0.0
    %1008 = vmatprep.subr.mxu0 0.0
    %1009 = vmatpush2.msra.mxu0 0.0
    %1010 = vmatprep.subr.mxu0 0.0
    %1011 = vmatpush2.msra.mxu0 0.0
    %1012 = vmatprep.subr.mxu0 0.0
    %1013 = vmatpush2.msra.mxu0 0.0
    %1014 = vmatprep.mubr.f32.mxu0 0.0
    %1015 = vmatmul.mubr.f32.gmra.mxu0 %v948
    %v1016 = vpop.f32.mrf.mxu0
    %v1017 = vadd.f32 0.0, %v1016
    %v1018 = vpop.f32.mrf.mxu0
    %1019 = vdwg.mxu0
    %1020 = vrot.lane.b32.xlu0 %v104, 48
    %v1021 = vpop.permute.xlu0 %1020
    %v1024 = vsel %vm110, %v943, 0
    %1026 = vmatprep.subr.mxu0 0.0
    %1027 = vmatpush1.msra.mxu0 0.0
    %1028 = vmatprep.subr.mxu0 0.0
    %1029 = vmatpush1.msra.mxu0 0.0
    %1030 = vmatprep.subr.mxu0 0.0
    %1031 = vmatpush1.msra.mxu0 0.0
    %1032 = vmatprep.subr.mxu0 0.0
    %1033 = vmatpush1.msra.mxu0 0.0
    %1034 = vmatprep.subr.mxu0 0.0
    %1035 = vmatpush1.msra.mxu0 0.0
    %1036 = vmatprep.subr.mxu0 0.0
    %1037 = vmatpush1.msra.mxu0 0.0
    %1038 = vmatprep.subr.mxu0 0.0
    %1039 = vmatpush1.msra.mxu0 0.0
    %1040 = vmatprep.subr.mxu0 0.0
    %1041 = vmatpush1.msra.mxu0 0.0
    %1042 = vmatprep.subr.mxu0 0.0
    %1043 = vmatpush1.msra.mxu0 0.0
    %1044 = vmatprep.subr.mxu0 0.0
    %1045 = vmatpush1.msra.mxu0 0.0
    %1046 = vmatprep.subr.mxu0 0.0
    %1047 = vmatpush1.msra.mxu0 0.0
    %1048 = vmatprep.subr.mxu0 0.0
    %1049 = vmatpush1.msra.mxu0 0.0
    %1050 = vmatprep.subr.mxu0 0.0
    %1051 = vmatpush1.msra.mxu0 0.0
    %1052 = vmatprep.subr.mxu0 0.0
    %1053 = vmatpush1.msra.mxu0 0.0
    %1054 = vmatprep.subr.mxu0 0.0
    %1055 = vmatpush1.msra.mxu0 0.0
    %1056 = vmatprep.subr.mxu0 0.0
    %1057 = vmatpush1.msra.mxu0 %v1021
    %1058 = vmatprep.subr.mxu0 0.0
    %1059 = vmatpush2.msra.mxu0 0.0
    %1060 = vmatprep.subr.mxu0 0.0
    %1061 = vmatpush2.msra.mxu0 0.0
    %1062 = vmatprep.subr.mxu0 0.0
    %1063 = vmatpush2.msra.mxu0 0.0
    %1064 = vmatprep.subr.mxu0 0.0
    %1065 = vmatpush2.msra.mxu0 0.0
    %1066 = vmatprep.subr.mxu0 0.0
    %1067 = vmatpush2.msra.mxu0 0.0
    %1068 = vmatprep.subr.mxu0 0.0
    %1069 = vmatpush2.msra.mxu0 0.0
    %1070 = vmatprep.subr.mxu0 0.0
    %1071 = vmatpush2.msra.mxu0 0.0
    %1072 = vmatprep.subr.mxu0 0.0
    %1073 = vmatpush2.msra.mxu0 0.0
    %1074 = vmatprep.subr.mxu0 0.0
    %1075 = vmatpush2.msra.mxu0 0.0
    %1076 = vmatprep.subr.mxu0 0.0
    %1077 = vmatpush2.msra.mxu0 0.0
    %1078 = vmatprep.subr.mxu0 0.0
    %1079 = vmatpush2.msra.mxu0 0.0
    %1080 = vmatprep.subr.mxu0 0.0
    %1081 = vmatpush2.msra.mxu0 0.0
    %1082 = vmatprep.subr.mxu0 0.0
    %1083 = vmatpush2.msra.mxu0 0.0
    %1084 = vmatprep.subr.mxu0 0.0
    %1085 = vmatpush2.msra.mxu0 0.0
    %1086 = vmatprep.subr.mxu0 0.0
    %1087 = vmatpush2.msra.mxu0 0.0
    %1088 = vmatprep.subr.mxu0 0.0
    %1089 = vmatpush2.msra.mxu0 0.0
    %1090 = vmatprep.mubr.f32.mxu0 0.0
    %1091 = vmatmul.mubr.f32.gmra.mxu0 %v1024
    %v1092 = vpop.f32.mrf.mxu0
    %v1093 = vadd.f32 0.0, %v1092
    %v1094 = vpop.f32.mrf.mxu0
    %1095 = vdwg.mxu0
    %1096 = vrot.lane.b32.xlu0 %v101, 104
    %v1097 = vpop.permute.xlu0 %1096
    %1098 = vrot.lane.b32.xlu0 %v101, 72
    %v1099 = vpop.permute.xlu0 %1098
    %v1100 = vsel %vm110, %v1097, 0
    %v1102 = vsel %vm110, %v1099, 0
    %1104 = vmatprep.subr.mxu0 0.0
    %1105 = vmatpush1.xpose.msra.mxu0 0.0
    %1106 = vmatprep.subr.mxu0 0.0
    %1107 = vmatpush1.xpose.msra.mxu0 0.0
    %1108 = vmatprep.subr.mxu0 0.0
    %1109 = vmatpush1.xpose.msra.mxu0 0.0
    %1110 = vmatprep.subr.mxu0 0.0
    %1111 = vmatpush1.xpose.msra.mxu0 0.0
    %1112 = vmatprep.subr.mxu0 0.0
    %1113 = vmatpush1.xpose.msra.mxu0 0.0
    %1114 = vmatprep.subr.mxu0 0.0
    %1115 = vmatpush1.xpose.msra.mxu0 0.0
    %1116 = vmatprep.subr.mxu0 0.0
    %1117 = vmatpush1.xpose.msra.mxu0 0.0
    %1118 = vmatprep.subr.mxu0 0.0
    %1119 = vmatpush1.xpose.msra.mxu0 0.0
    %1120 = vmatprep.subr.mxu0 0.0
    %1121 = vmatpush1.xpose.msra.mxu0 0.0
    %1122 = vmatprep.subr.mxu0 0.0
    %1123 = vmatpush1.xpose.msra.mxu0 0.0
    %1124 = vmatprep.subr.mxu0 0.0
    %1125 = vmatpush1.xpose.msra.mxu0 0.0
    %1126 = vmatprep.subr.mxu0 0.0
    %1127 = vmatpush1.xpose.msra.mxu0 0.0
    %1128 = vmatprep.subr.mxu0 0.0
    %1129 = vmatpush1.xpose.msra.mxu0 0.0
    %1130 = vmatprep.subr.mxu0 0.0
    %1131 = vmatpush1.xpose.msra.mxu0 0.0
    %1132 = vmatprep.subr.mxu0 0.0
    %1133 = vmatpush1.xpose.msra.mxu0 0.0
    %1134 = vmatprep.subr.mxu0 0.0
    %1135 = vmatpush1.xpose.msra.mxu0 %v1102
    %1136 = vmatprep.subr.mxu0 0.0
    %1137 = vmatpush2.xpose.msra.mxu0 0.0
    %1138 = vmatprep.subr.mxu0 0.0
    %1139 = vmatpush2.xpose.msra.mxu0 0.0
    %1140 = vmatprep.subr.mxu0 0.0
    %1141 = vmatpush2.xpose.msra.mxu0 0.0
    %1142 = vmatprep.subr.mxu0 0.0
    %1143 = vmatpush2.xpose.msra.mxu0 0.0
    %1144 = vmatprep.subr.mxu0 0.0
    %1145 = vmatpush2.xpose.msra.mxu0 0.0
    %1146 = vmatprep.subr.mxu0 0.0
    %1147 = vmatpush2.xpose.msra.mxu0 0.0
    %1148 = vmatprep.subr.mxu0 0.0
    %1149 = vmatpush2.xpose.msra.mxu0 0.0
    %1150 = vmatprep.subr.mxu0 0.0
    %1151 = vmatpush2.xpose.msra.mxu0 0.0
    %1152 = vmatprep.subr.mxu0 0.0
    %1153 = vmatpush2.xpose.msra.mxu0 0.0
    %1154 = vmatprep.subr.mxu0 0.0
    %1155 = vmatpush2.xpose.msra.mxu0 0.0
    %1156 = vmatprep.subr.mxu0 0.0
    %1157 = vmatpush2.xpose.msra.mxu0 0.0
    %1158 = vmatprep.subr.mxu0 0.0
    %1159 = vmatpush2.xpose.msra.mxu0 0.0
    %1160 = vmatprep.subr.mxu0 0.0
    %1161 = vmatpush2.xpose.msra.mxu0 0.0
    %1162 = vmatprep.subr.mxu0 0.0
    %1163 = vmatpush2.xpose.msra.mxu0 0.0
    %1164 = vmatprep.subr.mxu0 0.0
    %1165 = vmatpush2.xpose.msra.mxu0 0.0
    %1166 = vmatprep.subr.mxu0 0.0
    %1167 = vmatpush2.xpose.msra.mxu0 0.0
    %1168 = vmatprep.mubr.f32.mxu0 0.0
    %1169 = vmatmul.mubr.f32.gmra.mxu0 %v1100
    %v1170 = vpop.f32.mrf.mxu0
    %v1171 = vadd.f32 0.0, %v1170
    %v1172 = vpop.f32.mrf.mxu0
    %1173 = vdwg.mxu0
    %1174 = vrot.lane.b32.xlu0 %v104, 104
    %v1175 = vpop.permute.xlu0 %1174
    %1176 = vrot.lane.b32.xlu0 %v104, 72
    %v1177 = vpop.permute.xlu0 %1176
    %v1178 = vsel %vm110, %v1175, 0
    %v1180 = vsel %vm110, %v1177, 0
    %1182 = vmatprep.subr.mxu0 0.0
    %1183 = vmatpush1.xpose.msra.mxu0 0.0
    %1184 = vmatprep.subr.mxu0 0.0
    %1185 = vmatpush1.xpose.msra.mxu0 0.0
    %1186 = vmatprep.subr.mxu0 0.0
    %1187 = vmatpush1.xpose.msra.mxu0 0.0
    %1188 = vmatprep.subr.mxu0 0.0
    %1189 = vmatpush1.xpose.msra.mxu0 0.0
    %1190 = vmatprep.subr.mxu0 0.0
    %1191 = vmatpush1.xpose.msra.mxu0 0.0
    %1192 = vmatprep.subr.mxu0 0.0
    %1193 = vmatpush1.xpose.msra.mxu0 0.0
    %1194 = vmatprep.subr.mxu0 0.0
    %1195 = vmatpush1.xpose.msra.mxu0 0.0
    %1196 = vmatprep.subr.mxu0 0.0
    %1197 = vmatpush1.xpose.msra.mxu0 0.0
    %1198 = vmatprep.subr.mxu0 0.0
    %1199 = vmatpush1.xpose.msra.mxu0 0.0
    %1200 = vmatprep.subr.mxu0 0.0
    %1201 = vmatpush1.xpose.msra.mxu0 0.0
    %1202 = vmatprep.subr.mxu0 0.0
    %1203 = vmatpush1.xpose.msra.mxu0 0.0
    %1204 = vmatprep.subr.mxu0 0.0
    %1205 = vmatpush1.xpose.msra.mxu0 0.0
    %1206 = vmatprep.subr.mxu0 0.0
    %1207 = vmatpush1.xpose.msra.mxu0 0.0
    %1208 = vmatprep.subr.mxu0 0.0
    %1209 = vmatpush1.xpose.msra.mxu0 0.0
    %1210 = vmatprep.subr.mxu0 0.0
    %1211 = vmatpush1.xpose.msra.mxu0 0.0
    %1212 = vmatprep.subr.mxu0 0.0
    %1213 = vmatpush1.xpose.msra.mxu0 %v1180
    %1214 = vmatprep.subr.mxu0 0.0
    %1215 = vmatpush2.xpose.msra.mxu0 0.0
    %1216 = vmatprep.subr.mxu0 0.0
    %1217 = vmatpush2.xpose.msra.mxu0 0.0
    %1218 = vmatprep.subr.mxu0 0.0
    %1219 = vmatpush2.xpose.msra.mxu0 0.0
    %1220 = vmatprep.subr.mxu0 0.0
    %1221 = vmatpush2.xpose.msra.mxu0 0.0
    %1222 = vmatprep.subr.mxu0 0.0
    %1223 = vmatpush2.xpose.msra.mxu0 0.0
    %1224 = vmatprep.subr.mxu0 0.0
    %1225 = vmatpush2.xpose.msra.mxu0 0.0
    %1226 = vmatprep.subr.mxu0 0.0
    %1227 = vmatpush2.xpose.msra.mxu0 0.0
    %1228 = vmatprep.subr.mxu0 0.0
    %1229 = vmatpush2.xpose.msra.mxu0 0.0
    %1230 = vmatprep.subr.mxu0 0.0
    %1231 = vmatpush2.xpose.msra.mxu0 0.0
    %1232 = vmatprep.subr.mxu0 0.0
    %1233 = vmatpush2.xpose.msra.mxu0 0.0
    %1234 = vmatprep.subr.mxu0 0.0
    %1235 = vmatpush2.xpose.msra.mxu0 0.0
    %1236 = vmatprep.subr.mxu0 0.0
    %1237 = vmatpush2.xpose.msra.mxu0 0.0
    %1238 = vmatprep.subr.mxu0 0.0
    %1239 = vmatpush2.xpose.msra.mxu0 0.0
    %1240 = vmatprep.subr.mxu0 0.0
    %1241 = vmatpush2.xpose.msra.mxu0 0.0
    %1242 = vmatprep.subr.mxu0 0.0
    %1243 = vmatpush2.xpose.msra.mxu0 0.0
    %1244 = vmatprep.subr.mxu0 0.0
    %1245 = vmatpush2.xpose.msra.mxu0 0.0
    %1246 = vmatprep.mubr.f32.mxu0 0.0
    %1247 = vmatmul.mubr.f32.gmra.mxu0 %v1178
    %v1248 = vpop.f32.mrf.mxu0
    %v1249 = vadd.f32 0.0, %v1248
    %v1250 = vpop.f32.mrf.mxu0
    %1251 = vdwg.mxu0
    %v1252 = vsel %vm110, %v1171, -inf
    %1253 = vmax.xlane.f32.xlu0 %v1252
    %v1254 = vpop.xlane.xlu0 %1253
    %v1255 = vsel %vm110, %v1249, -inf
    %1256 = vmax.xlane.f32.xlu0 %v1255
    %v1257 = vpop.xlane.xlu0 %1256
    %v1258 = vsub.f32 %v1171, %v1254
    %v1259 = vsub.f32 %v1249, %v1257
    %v1260 = vmul.f32 %v1258, 1.442695
    %v1261 = vpow.pop %v1260
    %v1262 = vmul.f32 %v1259, 1.442695
    %v1263 = vpow.pop %v1262
    %v1264 = vsel %vm110, %v1261, 0.0
    %1265 = vadd.xlane.f32.xlu0 %v1264
    %v1266 = vpop.xlane.xlu0 %1265
    %v1267 = vsel %vm110, %v1263, 0.0
    %1268 = vadd.xlane.f32.xlu0 %v1267
    %v1269 = vpop.xlane.xlu0 %1268
    %v1270 = vrcp.pop %v1266
    %v1271 = vrcp.pop %v1269
    %v1272 = vmul.f32 %v1261, %v1270
    %v1273 = vmul.f32 %v1263, %v1271
    %1274 = vrot.lane.b32.xlu0 %v101, 40
    %v1275 = vpop.permute.xlu0 %1274
    %v1278 = vsel %vm110, %v1272, 0
    %1280 = vmatprep.subr.mxu0 0.0
    %1281 = vmatpush1.msra.mxu0 0.0
    %1282 = vmatprep.subr.mxu0 0.0
    %1283 = vmatpush1.msra.mxu0 0.0
    %1284 = vmatprep.subr.mxu0 0.0
    %1285 = vmatpush1.msra.mxu0 0.0
    %1286 = vmatprep.subr.mxu0 0.0
    %1287 = vmatpush1.msra.mxu0 0.0
    %1288 = vmatprep.subr.mxu0 0.0
    %1289 = vmatpush1.msra.mxu0 0.0
    %1290 = vmatprep.subr.mxu0 0.0
    %1291 = vmatpush1.msra.mxu0 0.0
    %1292 = vmatprep.subr.mxu0 0.0
    %1293 = vmatpush1.msra.mxu0 0.0
    %1294 = vmatprep.subr.mxu0 0.0
    %1295 = vmatpush1.msra.mxu0 0.0
    %1296 = vmatprep.subr.mxu0 0.0
    %1297 = vmatpush1.msra.mxu0 0.0
    %1298 = vmatprep.subr.mxu0 0.0
    %1299 = vmatpush1.msra.mxu0 0.0
    %1300 = vmatprep.subr.mxu0 0.0
    %1301 = vmatpush1.msra.mxu0 0.0
    %1302 = vmatprep.subr.mxu0 0.0
    %1303 = vmatpush1.msra.mxu0 0.0
    %1304 = vmatprep.subr.mxu0 0.0
    %1305 = vmatpush1.msra.mxu0 0.0
    %1306 = vmatprep.subr.mxu0 0.0
    %1307 = vmatpush1.msra.mxu0 0.0
    %1308 = vmatprep.subr.mxu0 0.0
    %1309 = vmatpush1.msra.mxu0 0.0
    %1310 = vmatprep.subr.mxu0 0.0
    %1311 = vmatpush1.msra.mxu0 %v1275
    %1312 = vmatprep.subr.mxu0 0.0
    %1313 = vmatpush2.msra.mxu0 0.0
    %1314 = vmatprep.subr.mxu0 0.0
    %1315 = vmatpush2.msra.mxu0 0.0
    %1316 = vmatprep.subr.mxu0 0.0
    %1317 = vmatpush2.msra.mxu0 0.0
    %1318 = vmatprep.subr.mxu0 0.0
    %1319 = vmatpush2.msra.mxu0 0.0
    %1320 = vmatprep.subr.mxu0 0.0
    %1321 = vmatpush2.msra.mxu0 0.0
    %1322 = vmatprep.subr.mxu0 0.0
    %1323 = vmatpush2.msra.mxu0 0.0
    %1324 = vmatprep.subr.mxu0 0.0
    %1325 = vmatpush2.msra.mxu0 0.0
    %1326 = vmatprep.subr.mxu0 0.0
    %1327 = vmatpush2.msra.mxu0 0.0
    %1328 = vmatprep.subr.mxu0 0.0
    %1329 = vmatpush2.msra.mxu0 0.0
    %1330 = vmatprep.subr.mxu0 0.0
    %1331 = vmatpush2.msra.mxu0 0.0
    %1332 = vmatprep.subr.mxu0 0.0
    %1333 = vmatpush2.msra.mxu0 0.0
    %1334 = vmatprep.subr.mxu0 0.0
    %1335 = vmatpush2.msra.mxu0 0.0
    %1336 = vmatprep.subr.mxu0 0.0
    %1337 = vmatpush2.msra.mxu0 0.0
    %1338 = vmatprep.subr.mxu0 0.0
    %1339 = vmatpush2.msra.mxu0 0.0
    %1340 = vmatprep.subr.mxu0 0.0
    %1341 = vmatpush2.msra.mxu0 0.0
    %1342 = vmatprep.subr.mxu0 0.0
    %1343 = vmatpush2.msra.mxu0 0.0
    %1344 = vmatprep.mubr.f32.mxu0 0.0
    %1345 = vmatmul.mubr.f32.gmra.mxu0 %v1278
    %v1346 = vpop.f32.mrf.mxu0
    %v1347 = vadd.f32 0.0, %v1346
    %v1348 = vpop.f32.mrf.mxu0
    %1349 = vdwg.mxu0
    %1350 = vrot.lane.b32.xlu0 %v104, 40
    %v1351 = vpop.permute.xlu0 %1350
    %v1354 = vsel %vm110, %v1273, 0
    %1356 = vmatprep.subr.mxu0 0.0
    %1357 = vmatpush1.msra.mxu0 0.0
    %1358 = vmatprep.subr.mxu0 0.0
    %1359 = vmatpush1.msra.mxu0 0.0
    %1360 = vmatprep.subr.mxu0 0.0
    %1361 = vmatpush1.msra.mxu0 0.0
    %1362 = vmatprep.subr.mxu0 0.0
    %1363 = vmatpush1.msra.mxu0 0.0
    %1364 = vmatprep.subr.mxu0 0.0
    %1365 = vmatpush1.msra.mxu0 0.0
    %1366 = vmatprep.subr.mxu0 0.0
    %1367 = vmatpush1.msra.mxu0 0.0
    %1368 = vmatprep.subr.mxu0 0.0
    %1369 = vmatpush1.msra.mxu0 0.0
    %1370 = vmatprep.subr.mxu0 0.0
    %1371 = vmatpush1.msra.mxu0 0.0
    %1372 = vmatprep.subr.mxu0 0.0
    %1373 = vmatpush1.msra.mxu0 0.0
    %1374 = vmatprep.subr.mxu0 0.0
    %1375 = vmatpush1.msra.mxu0 0.0
    %1376 = vmatprep.subr.mxu0 0.0
    %1377 = vmatpush1.msra.mxu0 0.0
    %1378 = vmatprep.subr.mxu0 0.0
    %1379 = vmatpush1.msra.mxu0 0.0
    %1380 = vmatprep.subr.mxu0 0.0
    %1381 = vmatpush1.msra.mxu0 0.0
    %1382 = vmatprep.subr.mxu0 0.0
    %1383 = vmatpush1.msra.mxu0 0.0
    %1384 = vmatprep.subr.mxu0 0.0
    %1385 = vmatpush1.msra.mxu0 0.0
    %1386 = vmatprep.subr.mxu0 0.0
    %1387 = vmatpush1.msra.mxu0 %v1351
    %1388 = vmatprep.subr.mxu0 0.0
    %1389 = vmatpush2.msra.mxu0 0.0
    %1390 = vmatprep.subr.mxu0 0.0
    %1391 = vmatpush2.msra.mxu0 0.0
    %1392 = vmatprep.subr.mxu0 0.0
    %1393 = vmatpush2.msra.mxu0 0.0
    %1394 = vmatprep.subr.mxu0 0.0
    %1395 = vmatpush2.msra.mxu0 0.0
    %1396 = vmatprep.subr.mxu0 0.0
    %1397 = vmatpush2.msra.mxu0 0.0
    %1398 = vmatprep.subr.mxu0 0.0
    %1399 = vmatpush2.msra.mxu0 0.0
    %1400 = vmatprep.subr.mxu0 0.0
    %1401 = vmatpush2.msra.mxu0 0.0
    %1402 = vmatprep.subr.mxu0 0.0
    %1403 = vmatpush2.msra.mxu0 0.0
    %1404 = vmatprep.subr.mxu0 0.0
    %1405 = vmatpush2.msra.mxu0 0.0
    %1406 = vmatprep.subr.mxu0 0.0
    %1407 = vmatpush2.msra.mxu0 0.0
    %1408 = vmatprep.subr.mxu0 0.0
    %1409 = vmatpush2.msra.mxu0 0.0
    %1410 = vmatprep.subr.mxu0 0.0
    %1411 = vmatpush2.msra.mxu0 0.0
    %1412 = vmatprep.subr.mxu0 0.0
    %1413 = vmatpush2.msra.mxu0 0.0
    %1414 = vmatprep.subr.mxu0 0.0
    %1415 = vmatpush2.msra.mxu0 0.0
    %1416 = vmatprep.subr.mxu0 0.0
    %1417 = vmatpush2.msra.mxu0 0.0
    %1418 = vmatprep.subr.mxu0 0.0
    %1419 = vmatpush2.msra.mxu0 0.0
    %1420 = vmatprep.mubr.f32.mxu0 0.0
    %1421 = vmatmul.mubr.f32.gmra.mxu0 %v1354
    %v1422 = vpop.f32.mrf.mxu0
    %v1423 = vadd.f32 0.0, %v1422
    %v1424 = vpop.f32.mrf.mxu0
    %1425 = vdwg.mxu0
    %1428 = vrot.lane.b32.xlu0 %v687, 8
    %v1429 = vpop.permute.xlu0 %1428
    %1430 = vrot.lane.b32.xlu0 %v763, 8
    %v1431 = vpop.permute.xlu0 %1430
    %1436 = vrot.lane.b32.xlu0 %v1017, 16
    %v1437 = vpop.permute.xlu0 %1436
    %1438 = vrot.lane.b32.xlu0 %v1093, 16
    %v1439 = vpop.permute.xlu0 %1438
    %1444 = vrot.lane.b32.xlu0 %v1347, 24
    %v1445 = vpop.permute.xlu0 %1444
    %1446 = vrot.lane.b32.xlu0 %v1423, 24
    %v1447 = vpop.permute.xlu0 %1446
    %v1450 = vsel %vm110, %v357, %v1429
    %v1451 = vsel %vm110, %v433, %v1431
    %vm1452 = vcmask 130048
    %v1453 = vsel %vm1452, %v1450, %v1437
    %v1454 = vsel %vm1452, %v1451, %v1439
    %vm1455 = vcmask 195584
    %v1456 = vsel %vm1455, %v1453, %v1445
    %v1457 = vsel %vm1455, %v1454, %v1447
    %v1458 = vpack.c.bf16 %v1457, %v1456
    %v1459 = vld [vmem:[%s2] sm:$0xf]
    %v1460 = vld [vmem:[%s2 + $0x4] sm:$0xf]
    %v1461 = vld [vmem:[%s2 + $0x8] sm:$0xf]
    %v1462 = vld [vmem:[%s2 + $0xc] sm:$0xf]
    %v1463 = vld [vmem:[%s3] sm:$0x1]
    %v1465 = vlaneseq
    %v1466 = vshrl.u32 %v1465, 7
    %v1467 = vsub.s32 0, %v1466
    %v1468 = vrot.slane %v1463, %v1467
    %v1474 = vunpack.c.l.b16 %v1459
    %v1475 = vunpack.c.l.b16 %v1460
    %v1476 = vunpack.c.l.b16 %v1461
    %v1477 = vunpack.c.l.b16 %v1462
    %v1478 = vpack.c.b16 %v1475, %v1474
    %v1479 = vpack.c.b16 %v1477, %v1476
    %v1483 = vsel %vm62, %v1458, 0
    %1485 = vmatprep.subr.bf16.mxu0 0
    %1486 = vmatpush1.bf16.msra.mxu0 0
    %1487 = vmatprep.subr.bf16.mxu0 0
    %1488 = vmatpush1.bf16.msra.mxu0 0
    %1489 = vmatprep.subr.bf16.mxu0 0
    %1490 = vmatpush1.bf16.msra.mxu0 0
    %1491 = vmatprep.subr.bf16.mxu0 0
    %1492 = vmatpush1.bf16.msra.mxu0 0
    %1493 = vmatprep.subr.bf16.mxu0 0
    %1494 = vmatpush1.bf16.msra.mxu0 0
    %1495 = vmatprep.subr.bf16.mxu0 0
    %1496 = vmatpush1.bf16.msra.mxu0 0
    %1497 = vmatprep.subr.bf16.mxu0 0
    %1498 = vmatpush1.bf16.msra.mxu0 %v1479
    %1499 = vmatprep.subr.bf16.mxu0 0
    %1500 = vmatpush1.bf16.msra.mxu0 %v1478
    %1501 = vmatprep.subr.bf16.mxu0 0
    %1502 = vmatpush2.bf16.msra.mxu0 0
    %1503 = vmatprep.subr.bf16.mxu0 0
    %1504 = vmatpush2.bf16.msra.mxu0 0
    %1505 = vmatprep.subr.bf16.mxu0 0
    %1506 = vmatpush2.bf16.msra.mxu0 0
    %1507 = vmatprep.subr.bf16.mxu0 0
    %1508 = vmatpush2.bf16.msra.mxu0 0
    %1509 = vmatprep.subr.bf16.mxu0 0
    %1510 = vmatpush2.bf16.msra.mxu0 0
    %1511 = vmatprep.subr.bf16.mxu0 0
    %1512 = vmatpush2.bf16.msra.mxu0 0
    %1513 = vmatprep.subr.bf16.mxu0 0
    %1514 = vmatpush2.bf16.msra.mxu0 0
    %1515 = vmatprep.subr.bf16.mxu0 0
    %1516 = vmatpush2.bf16.msra.mxu0 0
    %1517 = vmatprep.mubr.bf16.mxu0 0
    %1518 = vmatmul.mubr.bf16.gmra.mxu0 %v1483
    %v1519 = vpop.f32.mrf.mxu0
    %v1520 = vadd.f32 %v1468, %v1519
    %v1521 = vpop.f32.mrf.mxu0
    %v1522 = vpop.f32.mrf.mxu0
    %v1523 = vadd.f32 %v1468, %v1522
    %v1524 = vpop.f32.mrf.mxu0
    %1525 = vdwg.mxu0
    %v1526 = vadd.f32 %v43, %v1520
    %v1527 = vadd.f32 %v44, %v1523
    %v1528 = vld [vmem:[%s4] sm:$0x1]
    %v1529 = vld [vmem:[%s5] sm:$0x1]
    %v1530 = vsel %vm62, %v1526, 0.0
    %1531 = vadd.xlane.f32.xlu0 %v1530
    %v1532 = vpop.xlane.xlu0 %1531
    %v1533 = vsel %vm62, %v1527, 0.0
    %1534 = vadd.xlane.f32.xlu0 %v1533
    %v1535 = vpop.xlane.xlu0 %1534
    %v1536 = vrcp.pop 32.0
    %v1537 = vmul.f32 %v1532, %v1536
    %v1538 = vmul.f32 %v1535, %v1536
    %v1539 = vsub.f32 %v1526, %v1537
    %v1540 = vsub.f32 %v1527, %v1538
    %v1541 = vmul.f32 %v1539, %v1539
    %v1542 = vmul.f32 %v1540, %v1540
    %v1543 = vsel %vm62, %v1541, 0.0
    %1544 = vadd.xlane.f32.xlu0 %v1543
    %v1545 = vpop.xlane.xlu0 %1544
    %v1546 = vsel %vm62, %v1542, 0.0
    %1547 = vadd.xlane.f32.xlu0 %v1546
    %v1548 = vpop.xlane.xlu0 %1547
    %v1549 = vmul.f32 %v1545, %v1536
    %v1550 = vmul.f32 %v1548, %v1536
    %v1551 = vadd.f32 %v1549, 1e-05
    %v1552 = vadd.f32 %v1550, 1e-05
    %v1553 = vrsqrt.pop %v1551
    %v1554 = vrsqrt.pop %v1552
    %v1555 = vmul.f32 %v1539, %v1553
    %v1556 = vmul.f32 %v1540, %v1554
    %v1558 = vlaneseq
    %v1559 = vshrl.u32 %v1558, 7
    %v1560 = vsub.s32 0, %v1559
    %v1561 = vrot.slane %v1528, %v1560
    %v1563 = vmul.f32 %v1555, %v1561
    %v1564 = vmul.f32 %v1556, %v1561
    %v1566 = vlaneseq
    %v1567 = vshrl.u32 %v1566, 7
    %v1568 = vsub.s32 0, %v1567
    %v1569 = vrot.slane %v1529, %v1568
    %v1571 = vadd.f32 %v1563, %v1569
    %v1572 = vadd.f32 %v1564, %v1569
    %v1573 = vpack.c.bf16 %v1572, %v1571
    %v1574 = vld [vmem:[%s6] sm:$0xf]
    %v1575 = vld [vmem:[%s6 + $0x4] sm:$0xf]
    %v1576 = vld [vmem:[%s6 + $0x8] sm:$0xf]
    %v1577 = vld [vmem:[%s6 + $0xc] sm:$0xf]
    %v1578 = vld [vmem:[%s7] sm:$0x1]
    %v1580 = vlaneseq
    %v1581 = vshrl.u32 %v1580, 7
    %v1582 = vsub.s32 0, %v1581
    %v1583 = vrot.slane %v1578, %v1582
    %v1589 = vunpack.c.l.b16 %v1574
    %v1590 = vunpack.c.l.b16 %v1575
    %v1591 = vunpack.c.l.b16 %v1576
    %v1592 = vunpack.c.l.b16 %v1577
    %v1593 = vpack.c.b16 %v1590, %v1589
    %v1594 = vpack.c.b16 %v1592, %v1591
    %v1598 = vsel %vm62, %v1573, 0
    %1600 = vmatprep.subr.bf16.mxu0 0
    %1601 = vmatpush1.bf16.msra.mxu0 0
    %1602 = vmatprep.subr.bf16.mxu0 0
    %1603 = vmatpush1.bf16.msra.mxu0 0
    %1604 = vmatprep.subr.bf16.mxu0 0
    %1605 = vmatpush1.bf16.msra.mxu0 0
    %1606 = vmatprep.subr.bf16.mxu0 0
    %1607 = vmatpush1.bf16.msra.mxu0 0
    %1608 = vmatprep.subr.bf16.mxu0 0
    %1609 = vmatpush1.bf16.msra.mxu0 0
    %1610 = vmatprep.subr.bf16.mxu0 0
    %1611 = vmatpush1.bf16.msra.mxu0 0
    %1612 = vmatprep.subr.bf16.mxu0 0
    %1613 = vmatpush1.bf16.msra.mxu0 %v1594
    %1614 = vmatprep.subr.bf16.mxu0 0
    %1615 = vmatpush1.bf16.msra.mxu0 %v1593
    %1616 = vmatprep.subr.bf16.mxu0 0
    %1617 = vmatpush2.bf16.msra.mxu0 0
    %1618 = vmatprep.subr.bf16.mxu0 0
    %1619 = vmatpush2.bf16.msra.mxu0 0
    %1620 = vmatprep.subr.bf16.mxu0 0
    %1621 = vmatpush2.bf16.msra.mxu0 0
    %1622 = vmatprep.subr.bf16.mxu0 0
    %1623 = vmatpush2.bf16.msra.mxu0 0
    %1624 = vmatprep.subr.bf16.mxu0 0
    %1625 = vmatpush2.bf16.msra.mxu0 0
    %1626 = vmatprep.subr.bf16.mxu0 0
    %1627 = vmatpush2.bf16.msra.mxu0 0
    %1628 = vmatprep.subr.bf16.mxu0 0
    %1629 = vmatpush2.bf16.msra.mxu0 0
    %1630 = vmatprep.subr.bf16.mxu0 0
    %1631 = vmatpush2.bf16.msra.mxu0 0
    %1632 = vmatprep.mubr.bf16.mxu0 0
    %1633 = vmatmul.mubr.bf16.gmra.mxu0 %v1598
    %v1634 = vpop.f32.mrf.mxu0
    %v1635 = vadd.f32 %v1583, %v1634
    %v1636 = vpop.f32.mrf.mxu0
    %v1637 = vpop.f32.mrf.mxu0
    %v1638 = vadd.f32 %v1583, %v1637
    %v1639 = vpop.f32.mrf.mxu0
    %1640 = vdwg.mxu0
    %v1641 = vmax.f32 %v1635, 0.0
    %v1642 = vmax.f32 %v1638, 0.0
    %v1643 = vpack.c.bf16 %v1642, %v1641
    %v1644 = vld [vmem:[%s8] sm:$0xf]
    %v1645 = vld [vmem:[%s8 + $0x4] sm:$0xf]
    %v1646 = vld [vmem:[%s8 + $0x8] sm:$0xf]
    %v1647 = vld [vmem:[%s8 + $0xc] sm:$0xf]
    %v1648 = vld [vmem:[%s8 + $0x10] sm:$0xf]
    %v1649 = vld [vmem:[%s8 + $0x14] sm:$0xf]
    %v1650 = vld [vmem:[%s8 + $0x18] sm:$0xf]
    %v1651 = vld [vmem:[%s8 + $0x1c] sm:$0xf]
    %v1652 = vld [vmem:[%s8 + $0x20] sm:$0xf]
    %v1653 = vld [vmem:[%s8 + $0x24] sm:$0xf]
    %v1654 = vld [vmem:[%s8 + $0x28] sm:$0xf]
    %v1655 = vld [vmem:[%s8 + $0x2c] sm:$0xf]
    %v1656 = vld [vmem:[%s8 + $0x30] sm:$0xf]
    %v1657 = vld [vmem:[%s8 + $0x34] sm:$0xf]
    %v1658 = vld [vmem:[%s8 + $0x38] sm:$0xf]
    %v1659 = vld [vmem:[%s8 + $0x3c] sm:$0xf]
    %v1660 = vld [vmem:[%s9] sm:$0x1]
    %v1662 = vlaneseq
    %v1663 = vshrl.u32 %v1662, 7
    %v1664 = vsub.s32 0, %v1663
    %v1665 = vrot.slane %v1660, %v1664
    %v1683 = vunpack.c.l.b16 %v1644
    %v1684 = vunpack.c.l.b16 %v1645
    %v1685 = vunpack.c.l.b16 %v1646
    %v1686 = vunpack.c.l.b16 %v1647
    %v1687 = vunpack.c.l.b16 %v1648
    %v1688 = vunpack.c.l.b16 %v1649
    %v1689 = vunpack.c.l.b16 %v1650
    %v1690 = vunpack.c.l.b16 %v1651
    %v1691 = vunpack.c.l.b16 %v1652
    %v1692 = vunpack.c.l.b16 %v1653
    %v1693 = vunpack.c.l.b16 %v1654
    %v1694 = vunpack.c.l.b16 %v1655
    %v1695 = vunpack.c.l.b16 %v1656
    %v1696 = vunpack.c.l.b16 %v1657
    %v1697 = vunpack.c.l.b16 %v1658
    %v1698 = vunpack.c.l.b16 %v1659
    %v1699 = vpack.c.b16 %v1684, %v1683
    %v1700 = vpack.c.b16 %v1686, %v1685
    %v1701 = vpack.c.b16 %v1688, %v1687
    %v1702 = vpack.c.b16 %v1690, %v1689
    %v1703 = vpack.c.b16 %v1692, %v1691
    %v1704 = vpack.c.b16 %v1694, %v1693
    %v1705 = vpack.c.b16 %v1696, %v1695
    %v1706 = vpack.c.b16 %v1698, %v1697
    %1715 = vmatprep.subr.bf16.mxu0 0
    %1716 = vmatpush1.bf16.msra.mxu0 %v1706
    %1717 = vmatprep.subr.bf16.mxu0 0
    %1718 = vmatpush1.bf16.msra.mxu0 %v1705
    %1719 = vmatprep.subr.bf16.mxu0 0
    %1720 = vmatpush1.bf16.msra.mxu0 %v1704
    %1721 = vmatprep.subr.bf16.mxu0 0
    %1722 = vmatpush1.bf16.msra.mxu0 %v1703
    %1723 = vmatprep.subr.bf16.mxu0 0
    %1724 = vmatpush1.bf16.msra.mxu0 %v1702
    %1725 = vmatprep.subr.bf16.mxu0 0
    %1726 = vmatpush1.bf16.msra.mxu0 %v1701
    %1727 = vmatprep.subr.bf16.mxu0 0
    %1728 = vmatpush1.bf16.msra.mxu0 %v1700
    %1729 = vmatprep.subr.bf16.mxu0 0
    %1730 = vmatpush1.bf16.msra.mxu0 %v1699
    %1731 = vmatprep.subr.bf16.mxu0 0
    %1732 = vmatpush2.bf16.msra.mxu0 0
    %1733 = vmatprep.subr.bf16.mxu0 0
    %1734 = vmatpush2.bf16.msra.mxu0 0
    %1735 = vmatprep.subr.bf16.mxu0 0
    %1736 = vmatpush2.bf16.msra.mxu0 0
    %1737 = vmatprep.subr.bf16.mxu0 0
    %1738 = vmatpush2.bf16.msra.mxu0 0
    %1739 = vmatprep.subr.bf16.mxu0 0
    %1740 = vmatpush2.bf16.msra.mxu0 0
    %1741 = vmatprep.subr.bf16.mxu0 0
    %1742 = vmatpush2.bf16.msra.mxu0 0
    %1743 = vmatprep.subr.bf16.mxu0 0
    %1744 = vmatpush2.bf16.msra.mxu0 0
    %1745 = vmatprep.subr.bf16.mxu0 0
    %1746 = vmatpush2.bf16.msra.mxu0 0
    %1747 = vmatprep.mubr.bf16.mxu0 0
    %1748 = vmatmul.mubr.bf16.gmra.mxu0 %v1643
    %v1749 = vpop.f32.mrf.mxu0
    %v1750 = vadd.f32 %v1665, %v1749
    %v1751 = vpop.f32.mrf.mxu0
    %v1752 = vpop.f32.mrf.mxu0
    %v1753 = vadd.f32 %v1665, %v1752
    %v1754 = vpop.f32.mrf.mxu0
    %1755 = vdwg.mxu0
    %v1756 = vadd.f32 %v1571, %v1750
    %v1757 = vadd.f32 %v1572, %v1753
    %v1758 = vld [vmem:[%s10] sm:$0x1]
    %v1759 = vld [vmem:[%s11] sm:$0x1]
    %v1760 = vsel %vm62, %v1756, 0.0
    %1761 = vadd.xlane.f32.xlu0 %v1760
    %v1762 = vpop.xlane.xlu0 %1761
    %v1763 = vsel %vm62, %v1757, 0.0
    %1764 = vadd.xlane.f32.xlu0 %v1763
    %v1765 = vpop.xlane.xlu0 %1764
    %v1766 = vmul.f32 %v1762, %v1536
    %v1767 = vmul.f32 %v1765, %v1536
    %v1768 = vsub.f32 %v1756, %v1766
    %v1769 = vsub.f32 %v1757, %v1767
    %v1770 = vmul.f32 %v1768, %v1768
    %v1771 = vmul.f32 %v1769, %v1769
    %v1772 = vsel %vm62, %v1770, 0.0
    %1773 = vadd.xlane.f32.xlu0 %v1772
    %v1774 = vpop.xlane.xlu0 %1773
    %v1775 = vsel %vm62, %v1771, 0.0
    %1776 = vadd.xlane.f32.xlu0 %v1775
    %v1777 = vpop.xlane.xlu0 %1776
    %v1778 = vmul.f32 %v1774, %v1536
    %v1779 = vmul.f32 %v1777, %v1536
    %v1780 = vadd.f32 %v1778, 1e-05
    %v1781 = vadd.f32 %v1779, 1e-05
    %v1782 = vrsqrt.pop %v1780
    %v1783 = vrsqrt.pop %v1781
    %v1784 = vmul.f32 %v1768, %v1782
    %v1785 = vmul.f32 %v1769, %v1783
    %v1787 = vlaneseq
    %v1788 = vshrl.u32 %v1787, 7
    %v1789 = vsub.s32 0, %v1788
    %v1790 = vrot.slane %v1758, %v1789
    %v1792 = vmul.f32 %v1784, %v1790
    %v1793 = vmul.f32 %v1785, %v1790
    %v1795 = vlaneseq
    %v1796 = vshrl.u32 %v1795, 7
    %v1797 = vsub.s32 0, %v1796
    %v1798 = vrot.slane %v1759, %v1797
    %v1800 = vadd.f32 %v1792, %v1798
    %v1801 = vadd.f32 %v1793, %v1798
    %1802 = vst.msk [vmem:[#allocation2] sm:$0xff] %vm62, %v1800
    %1803 = vst.msk [vmem:[#allocation2 + $0x8] sm:$0xff] %vm62, %v1801
    // Predicated region
    $region50: #{tpu_custom_call.1} parent=1 // pred_check
      _
    $region51: #{tpu_custom_call.1} parent=1 // pred_check_branch
      %1805 = sbr.rel (0) target = $region53
    $region52: #{tpu_custom_call.1} parent=1 // pred_region
      %s1807 = ssub.s32 256, 256
      %1808 = vsyncadd [#allocation3], %s1807
      %s1809 = sshll.u32 [#allocation2], 4
      %s1810 = int_to_ptr.vmem [resolvable:$true] %s1809
      %1815 = dma.vmem_to_hbm [thread:$0]  %s1810, 256, %s12, [#allocation3], 128, 128, 8
    $region53: #{tpu_custom_call.1} parent=1 // pred_fallthru
      _
    // Predicated region
    $region54: #{tpu_custom_call.1} parent=1 // pred_check
      _
    $region55: #{tpu_custom_call.1} parent=1 // pred_check_branch
      %1817 = sbr.rel (0) target = $region57
    $region56: #{tpu_custom_call.1} parent=1 // pred_region
      %1818 = dma.done [#allocation3], 256
    $region57: #{tpu_custom_call.1} parent=1 // pred_fallthru
      _
    %1819 = vsyncpa [#allocation3], 1

</llo_original>
